<compile_context>
chip_gen: v5e
topology: v5e:2x2
jax: 0.10.0
libtpu: 0.0.40
codegen_flags: <defaults>
</compile_context>

<pallas_src>
import functools

import jax
import jax.numpy as jnp
from jax import lax
from jax.experimental import pallas as pl
from jax.experimental.pallas import tpu as pltpu

_VMEM_LIMIT = 32 * 1024 * 1024  # within default physical VMEM on all gens


def _tile(dim, pref, mult):
    """Largest divisor of `dim` that is <= pref and a multiple of `mult`.

    Falls back to the full extent only if no such divisor exists (keeps
    pipelining and bounded VMEM for awkward dims like 768/2304)."""
    if dim <= pref:
        return dim
    for cand in range(min(pref, dim), mult - 1, -1):
        if dim % cand == 0 and cand % mult == 0:
            return cand
    return dim


# ----------------------------------------------------------------------------
# Kernel 1/2: tiled linear projection  y = x @ W + b  (qkv_proj, out_proj)
#   grid = (S//tm, E_out//tn, E_in//tk), f32 accumulator, bf16 MXU operands.
# ----------------------------------------------------------------------------
def _linear_kernel(x_ref, w_ref, b_ref, o_ref, acc_ref):
    k = pl.program_id(2)

    @pl.when(k == 0)
    def _():
        acc_ref[...] = jnp.zeros(acc_ref.shape, dtype=acc_ref.dtype)

    acc_ref[...] += jnp.dot(x_ref[...], w_ref[...],
                            preferred_element_type=jnp.float32)

    @pl.when(k == pl.num_programs(2) - 1)
    def _():
        o_ref[...] = (acc_ref[...] + b_ref[...].astype(jnp.float32)
                      ).astype(o_ref.dtype)


def linear(x, w, b, *, tm=256, tn=512, tk=256):
    """y = x @ w + b.  x: (S, E_in) bf16, w: (E_in, E_out) bf16, b: (E_out,) f32.

    For very large E on v5e (weight-streaming regime) bump tm/tn/tk toward 512
    and raise vmem_limit_bytes; re-derive the budget for v7x's 64 MiB VMEM."""
    S, E_in = x.shape
    E_out = w.shape[1]
    tm = _tile(S, tm, 8)
    tn = _tile(E_out, tn, 128)
    tk = _tile(E_in, tk, 128)
    grid = (S // tm, E_out // tn, E_in // tk)

    return pl.pallas_call(
        _linear_kernel,
        out_shape=jax.ShapeDtypeStruct((S, E_out), x.dtype),
        grid_spec=pltpu.PrefetchScalarGridSpec(
            num_scalar_prefetch=0,
            grid=grid,
            in_specs=[
                pl.BlockSpec((tm, tk), lambda i, j, k: (i, k)),
                pl.BlockSpec((tk, tn), lambda i, j, k: (k, j)),
                pl.BlockSpec((1, tn), lambda i, j, k: (0, j)),
            ],
            out_specs=pl.BlockSpec((tm, tn), lambda i, j, k: (i, j)),
            scratch_shapes=[pltpu.VMEM((tm, tn), jnp.float32)],
        ),
        compiler_params=pltpu.CompilerParams(
            dimension_semantics=("parallel", "parallel", "arbitrary"),
            vmem_limit_bytes=_VMEM_LIMIT),
        cost_estimate=pl.CostEstimate(
            flops=2 * S * E_in * E_out,
            transcendentals=0,
            bytes_accessed=S * E_in * 2 + E_in * E_out * 2
            + S * E_out * 2 + E_out * 4,
        ),
    )(x, w, b.reshape(1, E_out))


# ----------------------------------------------------------------------------
# Kernel 2/2: flash-style causal attention, q/k/v: [H, S, D] -> o: [H, S, D]
#   grid = (H, S//tq, S//tk); online softmax; fully-masked kv tiles are skipped
#   for compute AND clamped in the index_map so they issue no DMA.
#   Attention scaling is pre-folded into the Q projection weights.
# ----------------------------------------------------------------------------
def _flash_attn_kernel(q_ref, k_ref, v_ref, o_ref, m_sc, l_sc, acc_sc):
    qi = pl.program_id(1)
    ki = pl.program_id(2)
    tq = q_ref.shape[1]
    tk = k_ref.shape[1]

    @pl.when(ki == 0)
    def _():
        m_sc[...] = jnp.full(m_sc.shape, -jnp.inf, dtype=m_sc.dtype)
        l_sc[...] = jnp.zeros(l_sc.shape, dtype=l_sc.dtype)
        acc_sc[...] = jnp.zeros(acc_sc.shape, dtype=acc_sc.dtype)

    q_start = qi * tq
    kv_start = ki * tk

    def step(apply_mask):
        # q/k/v tiles are already bf16; softmax math stays in f32.
        s = jnp.dot(q_ref[0], k_ref[0].T,
                    preferred_element_type=jnp.float32)       # (tq, tk)
        if apply_mask:
            row = q_start + lax.broadcasted_iota(jnp.int32, (tq, tk), 0)
            col = kv_start + lax.broadcasted_iota(jnp.int32, (tq, tk), 1)
            s = jnp.where(col <= row, s, jnp.float32(-1e30))
        m_prev = m_sc[...]
        m_new = jnp.maximum(m_prev, jnp.max(s, axis=-1, keepdims=True))
        alpha = jnp.exp(m_prev - m_new)
        p = jnp.exp(s - m_new)
        l_sc[...] = alpha * l_sc[...] + jnp.sum(p, axis=-1, keepdims=True)
        acc_sc[...] = alpha * acc_sc[...] + jnp.dot(
            p.astype(v_ref.dtype), v_ref[0],
            preferred_element_type=jnp.float32)
        m_sc[...] = m_new

    # Fast path: tile fully below the causal diagonal -> no mask needed.
    @pl.when(kv_start + (tk - 1) <= q_start)
    def _():
        step(False)

    # Diagonal-straddling tile -> apply causal mask.
    # (Tiles fully above the diagonal are skipped entirely.)
    @pl.when(jnp.logical_and(kv_start + (tk - 1) > q_start,
                             kv_start <= q_start + (tq - 1)))
    def _():
        step(True)

    @pl.when(ki == pl.num_programs(2) - 1)
    def _():
        o_ref[0] = (acc_sc[...] * pl.reciprocal(l_sc[...], approx=True)
                    ).astype(o_ref.dtype)


def causal_flash_attention(q, k, v, *, tq=256, tk=256):
    H, S, D = q.shape
    tq = _tile(S, tq, 8)
    tk = _tile(S, tk, 8)
    # Leading grid axis is H ("parallel"): on v7x's 2 TensorCores keep H even
    # (true for OPT) so both cores stay busy.
    grid = (H, S // tq, S // tk)

    def kv_index_map(h, qi, ki):
        # Clamp to the causal boundary: grid steps above the diagonal map onto
        # an already-resident block and therefore issue no DMA.
        last_needed = ((qi + 1) * tq - 1) // tk
        return (h, jnp.minimum(ki, last_needed), 0)

    return pl.pallas_call(
        _flash_attn_kernel,
        out_shape=jax.ShapeDtypeStruct((H, S, D), q.dtype),
        grid_spec=pltpu.PrefetchScalarGridSpec(
            num_scalar_prefetch=0,
            grid=grid,
            in_specs=[
                pl.BlockSpec((1, tq, D), lambda h, qi, ki: (h, qi, 0)),
                pl.BlockSpec((1, tk, D), kv_index_map),
                pl.BlockSpec((1, tk, D), kv_index_map),
            ],
            out_specs=pl.BlockSpec((1, tq, D), lambda h, qi, ki: (h, qi, 0)),
            scratch_shapes=[
                pltpu.VMEM((tq, 1), jnp.float32),   # running max m
                pltpu.VMEM((tq, 1), jnp.float32),   # running sum l
                pltpu.VMEM((tq, D), jnp.float32),   # output accumulator
            ],
        ),
        compiler_params=pltpu.CompilerParams(
            dimension_semantics=("parallel", "parallel", "arbitrary"),
            vmem_limit_bytes=_VMEM_LIMIT),
        cost_estimate=pl.CostEstimate(
            flops=2 * H * S * S * D,           # ~causal half of 4*H*S*S*D
            transcendentals=H * S * S // 2,
            bytes_accessed=4 * H * S * D * 2,
        ),
    )(q, k, v)


# ----------------------------------------------------------------------------
# OPTAttention forward (glue in plain JAX, hot paths in Pallas)
# ----------------------------------------------------------------------------
class OPTAttentionPallas:
    def __init__(self, embed_dim, num_heads, key, bias=True,
                 lin_tiles=(256, 512, 256), attn_tiles=(256, 256)):
        assert embed_dim % num_heads == 0
        self.embed_dim = embed_dim
        self.num_heads = num_heads
        self.head_dim = embed_dim // num_heads
        self.scaling = self.head_dim ** (-0.5)
        self.lin_tiles = lin_tiles
        self.attn_tiles = attn_tiles

        k1, k2, k3, k4 = jax.random.split(key, 4)
        std = 0.02
        # Weights stored in bf16 (halves HBM->VMEM DMA for the streaming
        # linear layers); biases kept in f32, accumulation always in f32.
        w_qkv = std * jax.random.normal(k1, (embed_dim, 3 * embed_dim),
                                        dtype=jnp.float32)
        b_qkv = std * jax.random.normal(k2, (3 * embed_dim,),
                                        dtype=jnp.float32)
        # Fold the attention scaling into the Q slice of the qkv projection:
        # zero runtime cost, removes per-kv-step scale work in the kernel.
        w_qkv = w_qkv.at[:, :embed_dim].multiply(self.scaling)
        b_qkv = b_qkv.at[:embed_dim].multiply(self.scaling)
        self.w_qkv = w_qkv.astype(jnp.bfloat16)
        self.b_qkv = b_qkv

        self.w_out = (std * jax.random.normal(k3, (embed_dim, embed_dim),
                                              dtype=jnp.float32)
                      ).astype(jnp.bfloat16)
        self.b_out = std * jax.random.normal(k4, (embed_dim,),
                                             dtype=jnp.float32)

    def __call__(self, hidden_states):
        S, E = hidden_states.shape
        H, D = self.num_heads, self.head_dim
        tm, tn, tk = self.lin_tiles
        tq, tkv = self.attn_tiles

        # Keep activations bf16 end-to-end; f32 only inside accumulators.
        x = hidden_states.astype(jnp.bfloat16)

        qkv = linear(x, self.w_qkv, self.b_qkv, tm=tm, tn=tn, tk=tk)  # (S, 3E)
        q, k, v = jnp.split(qkv, 3, axis=-1)                          # (S, E)

        # (S, E) -> (S, H, D) -> (H, S, D)
        # TODO(synk): drop these transposes via column-offset BlockSpecs into
        #             the (S, 3E) qkv output once two-head packing (128-wide
        #             column blocks) is in place.
        q = q.reshape(S, H, D).transpose(1, 0, 2)
        k = k.reshape(S, H, D).transpose(1, 0, 2)
        v = v.reshape(S, H, D).transpose(1, 0, 2)

        attn_out = causal_flash_attention(q, k, v, tq=tq, tk=tkv)     # (H,S,D)
        attn_out = attn_out.transpose(1, 0, 2).reshape(S, E)          # (S, E)

        out = linear(attn_out, self.w_out, self.b_out, tm=tm, tn=tn, tk=tk)
        return out                                                    # bf16


# ----------------------------------------------------------------------------
# Pure-JAX reference (mirrors the bf16 boundaries of the kernels so the
# comparison isolates kernel bugs rather than bf16 quantization).
# ----------------------------------------------------------------------------
def reference_forward(mod, x):
    S, E = x.shape
    H, D = mod.num_heads, mod.head_dim
    f32 = jnp.float32
    bf = lambda a: a.astype(jnp.bfloat16).astype(f32)

    w_qkv = mod.w_qkv.astype(f32)   # already includes the folded Q scaling
    w_out = mod.w_out.astype(f32)

    qkv = bf(bf(x) @ w_qkv + mod.b_qkv)             # kernel stores qkv in bf16
    q, k, v = jnp.split(qkv, 3, axis=-1)
    q = q.reshape(S, H, D).transpose(1, 0, 2)
    k = k.reshape(S, H, D).transpose(1, 0, 2)
    v = v.reshape(S, H, D).transpose(1, 0, 2)

    s = jnp.einsum("hqd,hkd->hqk", q, k)            # scaling already in q
    mask = jnp.tril(jnp.ones((S, S), dtype=bool))
    s = jnp.where(mask[None], s, -1e30)
    p = jax.nn.softmax(s, axis=-1)
    o = jnp.einsum("hqk,hkd->hqd", bf(p), v)
    o = bf(o.transpose(1, 0, 2).reshape(S, E))      # kernel stores attn in bf16
    return bf(o @ w_out + mod.b_out)                # kernel stores out in bf16


if __name__ == "__main__":
    key = jax.random.PRNGKey(0)
    k_param, k_x = jax.random.split(key)

    # Small but multi-tile: exercises K-accumulation in the qkv/out projections
    # (tk=256 < E_in=512), the causal tile-skip / clamp path, the last-ki
    # finalize, and multi-head / multi-q-tile scratch reuse (grid (8, 2, 2)).
    seq_len = 512
    embed_dim = 512
    num_heads = 8

    mod = OPTAttentionPallas(embed_dim, num_heads, k_param)
    hidden_states = jax.random.normal(k_x, (seq_len, embed_dim),
                                      dtype=jnp.float32)

    out = mod(hidden_states)
    out = jax.block_until_ready(out)

    ref = reference_forward(mod, hidden_states)
    assert out.shape == (seq_len, embed_dim)
    assert jnp.allclose(out.astype(jnp.float32), ref,
                        atol=2e-2, rtol=2e-2), "mismatch vs reference"

    print("KERNEL_OK")
</pallas_src>

<mosaic_0001>
module attributes {stable_mosaic.version = 11 : i64} {
  func.func @_linear_kernel(%arg0: i32, %arg1: i32, %arg2: i32, %arg3: memref<256x256xbf16, #tpu.memory_space<vmem>>, %arg4: memref<256x512xbf16, #tpu.memory_space<vmem>>, %arg5: memref<1x512xf32, #tpu.memory_space<vmem>>, %arg6: memref<256x512xbf16, #tpu.memory_space<vmem>>, %arg7: memref<256x512xf32, #tpu.memory_space<vmem>>) attributes {dimension_semantics = [#tpu.dimension_semantics<parallel>, #tpu.dimension_semantics<parallel>, #tpu.dimension_semantics<arbitrary>], iteration_bounds = array<i64: 2, 3, 2>, scalar_prefetch = 0 : i64, scratch_operands = 1 : i64, tpu.core_type = #tpu.core_type<tc>, window_params = [{transform_indices = @transform_0, window_bounds = array<i64: 256, 256>}, {transform_indices = @transform_1, window_bounds = array<i64: 256, 512>}, {transform_indices = @transform_2, window_bounds = array<i64: 1, 512>}, {transform_indices = @transform_3, window_bounds = array<i64: 256, 512>}]} {
    %c0_i32 = arith.constant 0 : i32
    %0 = arith.cmpi eq, %arg2, %c0_i32 : i32
    %1 = arith.extui %0 : i1 to i32
    %c0_i32_0 = arith.constant 0 : i32
    %2 = arith.cmpi ne, %1, %c0_i32_0 : i32
    scf.if %2 {
      %cst_9 = arith.constant 0.000000e+00 : f32
      %12 = vector.broadcast %cst_9 : f32 to vector<256x512xf32>
      %c0_10 = arith.constant 0 : index
      %c0_11 = arith.constant 0 : index
      %13 = vector.load %arg7[%c0_10, %c0_11] : memref<256x512xf32, #tpu.memory_space<vmem>>, vector<256x512xf32>
      tpu.vector_store %arg7[%c0_10, %c0_11], %12 {strides = array<i32>} : memref<256x512xf32, #tpu.memory_space<vmem>>, vector<256x512xf32>,
    } else {
    }
    %c0 = arith.constant 0 : index
    %c0_1 = arith.constant 0 : index
    %3 = vector.load %arg7[%c0, %c0_1] : memref<256x512xf32, #tpu.memory_space<vmem>>, vector<256x512xf32>
    %c0_2 = arith.constant 0 : index
    %c0_3 = arith.constant 0 : index
    %4 = vector.load %arg3[%c0_2, %c0_3] : memref<256x256xbf16, #tpu.memory_space<vmem>>, vector<256x256xbf16>
    %c0_4 = arith.constant 0 : index
    %c0_5 = arith.constant 0 : index
    %5 = vector.load %arg4[%c0_4, %c0_5] : memref<256x512xbf16, #tpu.memory_space<vmem>>, vector<256x512xbf16>
    %cst = arith.constant dense<0.000000e+00> : vector<256x512xf32>
    %6 = tpu.matmul %4, %5, %cst {dimension_numbers = #tpu.dot_dimension_numbers<[1], [0], [0], [1], [0, 0, 1, 1], [], []>} : vector<256x256xbf16>, vector<256x512xbf16>, vector<256x512xf32> -> vector<256x512xf32>
    %7 = arith.addf %3, %6 : vector<256x512xf32>
    %c0_6 = arith.constant 0 : index
    %c0_7 = arith.constant 0 : index
    %8 = vector.load %arg7[%c0_6, %c0_7] : memref<256x512xf32, #tpu.memory_space<vmem>>, vector<256x512xf32>
    tpu.vector_store %arg7[%c0_6, %c0_7], %7 {strides = array<i32>} : memref<256x512xf32, #tpu.memory_space<vmem>>, vector<256x512xf32>,
    %c1_i32 = arith.constant 1 : i32
    %9 = arith.cmpi eq, %arg2, %c1_i32 : i32
    %10 = arith.extui %9 : i1 to i32
    %c0_i32_8 = arith.constant 0 : i32
    %11 = arith.cmpi ne, %10, %c0_i32_8 : i32
    scf.if %11 {
      %c0_9 = arith.constant 0 : index
      %c0_10 = arith.constant 0 : index
      %12 = vector.load %arg7[%c0_9, %c0_10] : memref<256x512xf32, #tpu.memory_space<vmem>>, vector<256x512xf32>
      %c0_11 = arith.constant 0 : index
      %c0_12 = arith.constant 0 : index
      %13 = vector.load %arg5[%c0_11, %c0_12] : memref<1x512xf32, #tpu.memory_space<vmem>>, vector<1x512xf32>
      %14 = vector.broadcast %13 : vector<1x512xf32> to vector<256x512xf32>
      %15 = arith.addf %12, %14 : vector<256x512xf32>
      %16 = arith.truncf %15 : vector<256x512xf32> to vector<256x512xbf16>
      %c0_13 = arith.constant 0 : index
      %c0_14 = arith.constant 0 : index
      %17 = vector.load %arg6[%c0_13, %c0_14] : memref<256x512xbf16, #tpu.memory_space<vmem>>, vector<256x512xbf16>
      tpu.vector_store %arg6[%c0_13, %c0_14], %16 {strides = array<i32>} : memref<256x512xbf16, #tpu.memory_space<vmem>>, vector<256x512xbf16>,
    } else {
    }
    return
  }
  func.func @transform_0(%arg0: i32, %arg1: i32, %arg2: i32) -> (i32, i32) {
    %c0_i32 = arith.constant 0 : i32
    return %arg0, %arg2 : i32, i32
  }
  func.func @transform_1(%arg0: i32, %arg1: i32, %arg2: i32) -> (i32, i32) {
    %c0_i32 = arith.constant 0 : i32
    return %arg2, %arg1 : i32, i32
  }
  func.func @transform_2(%arg0: i32, %arg1: i32, %arg2: i32) -> (i32, i32) {
    %c0_i32 = arith.constant 0 : i32
    %c0_i32_0 = arith.constant 0 : i32
    return %c0_i32, %arg1 : i32, i32
  }
  func.func @transform_3(%arg0: i32, %arg1: i32, %arg2: i32) -> (i32, i32) {
    %c0_i32 = arith.constant 0 : i32
    return %arg0, %arg1 : i32, i32
  }
}

</mosaic_0001>

<llo_original>
// kernel: tpu_custom_call.1
$region0: #{tpu_custom_call.1}
  #allocation0 [shape = 'u32[]', space=smem, size = 0x4, offset = 0x4, fixed_abs, tag = 'smem constant byte address 0x4 - core index']
  #allocation1 [shape = 'u32[72,128]{1,0:T(1,128)}', space=vmem, size = 0x9000, scoped, tag = 'internal scratch']
  #allocation2 [shape = 'f32[256,512]{1,0:T(8,128)}', space=vmem, size = 0x80000, scoped, tag = 'scratch operand']
  %s0 = inlined_call_operand.hbm [shape: bf16[512,512], index: 0, kind: input, shape index: {}]
  %s1 = inlined_call_operand.hbm [shape: bf16[512,1536], index: 1, kind: input, shape index: {}]
  %s2 = inlined_call_operand.hbm [shape: f32[1,1536], index: 2, kind: input, shape index: {}]
  %s3 = inlined_call_operand.hbm [shape: bf16[512,1536], index: 3, kind: output, shape index: {}]
  %s4 = sld [smem:[#allocation0]]
  $region65: #{tpu_custom_call.1} parent=0
    _
  %s6 = ssub.s32 1, %s4
  %s7 = scalar_select 0, %s6, %s4
  $region1: #{tpu_custom_call.1} parent=0
    #allocation3 [shape = 'u8[262144]{0}', space=vmem, size = 0x40000, scoped, tag = 'input window, operand 0']
    #allocation4 [shape = 's32[2]{0}', space=sflag, size = 0x8, scoped, tag = 'scoped memory for tpu_custom_call.1']
    #allocation5 [shape = 's32[2]{0}', space=sflag, size = 0x8, scoped, tag = 'scoped memory for tpu_custom_call.1']
    #allocation6 [shape = 'u8[524288]{0}', space=vmem, size = 0x80000, scoped, tag = 'input window, operand 1']
    #allocation7 [shape = 's32[2]{0}', space=sflag, size = 0x8, scoped, tag = 'scoped memory for tpu_custom_call.1']
    #allocation8 [shape = 'u8[4096]{0}', space=vmem, size = 0x1000, scoped, tag = 'input window, operand 2']
    #allocation9 [shape = 'u8[524288]{0}', space=vmem, size = 0x80000, scoped, tag = 'output window, operand 0']
    %8 = vsyncpa [#allocation4], 0
    %s9 = scalar_lea.sflag [#allocation4], 1
    %10 = vsyncpa %s9, 0
    %11 = vsyncpa [#allocation7], 0
    %s12 = scalar_lea.sflag [#allocation7], 1
    %13 = vsyncpa %s12, 0
    %14 = vsyncpa [#allocation5], 0
    %s15 = scalar_lea.sflag [#allocation5], 1
    %16 = vsyncpa %s15, 0
    loop: start=0, step=1, limit=14
    $region2: #{tpu_custom_call.1} parent=1 // loop_pre_header
      _
    $region3: #{tpu_custom_call.1} parent=1 // loop_header
      %s18 = sphi 0, %s22
      %p19 = scmp.ge.s32.totalorder %s18, 14
      %s25 = sphi 0, %s44
      %s26 = sphi 0, %s40
      %s27 = sphi 0, %s36
      %s28 = sphi 0, %s25
      %s29 = sphi 0, %s26
      %s30 = sphi 0, %s27
      %s31 = sphi 0, %s28
      %s32 = sphi 0, %s29
      %s33 = sphi 0, %s30
      %s49 = sphi 0, %s51
      %s52 = sphi 0, %s49
      %s53 = sphi 0, %s52
      %s69 = sphi 0, %s53
      %s77 = sphi 0, %s79
      %s80 = sphi 0, %s77
      %s81 = sphi 0, %s80
      %s97 = sphi 0, %s81
      %s103 = sphi 0, %s105
      %s106 = sphi 0, %s103
      %s107 = sphi 0, %s106
      %s123 = sphi 0, %s107
      %s131 = sphi 0, %s133
      %s134 = sphi 0, %s131
      %s135 = sphi 0, %s134
      %s151 = sphi 0, %s135
    $region4: #{tpu_custom_call.1} parent=1 // loop_header_branch
      %21 = sbr.rel (%p19) target = $region8
    $region5: #{tpu_custom_call.1} parent=1 // loop_body
      %s23 = ssub.s32 %s18, 1
      %s24 = ssub.s32 %s18, 2
      %s34 = sadd.s32 1, %s27
      %p35 = scmp.ge.s32.totalorder %s34, 2
      %s36 = scalar_select %p35, 0, %s34
      %s37 = sadd.s32 1, %s26
      %s38 = scalar_select %p35, %s37, %s26
      %p39 = scmp.ge.s32.totalorder %s38, 3
      %s40 = scalar_select %p39, 0, %s38
      %s41 = sadd.s32 1, %s25
      %s42 = scalar_select %p39, %s41, %s25
      %p43 = scmp.ge.s32.totalorder %s42, 2
      %s44 = scalar_select %p43, 0, %s42
      %s45 = ssub.s32 %s25, %s44
      %s46 = ssub.s32 %s27, %s36
      %s47 = sor.u32 %s45, %s46
      %p48 = scmp.eq.s32.totalorder %s47, 0
      %s50 = sadd.s32 %s49, 1
      %s51 = scalar_select %p48, %s49, %s50
      %p54 = pneg %p48
      %p55 = scmp.eq.s32.totalorder %s18, 11
      %p56 = por %p54, %p55
      %p57 = scmp.ne.s32.totalorder %s49, %s52
      %p58 = scmp.eq.s32.totalorder %s18, 0
      %p59 = por %p57, %p58
      %p60 = scmp.ne.s32.totalorder %s49, %s52
      %p61 = scmp.eq.s32.totalorder %s23, 11
      %p62 = por %p60, %p61
      %p63 = scmp.ne.s32.totalorder %s52, %s53
      %p64 = scmp.eq.s32.totalorder %s23, 0
      %p65 = por %p63, %p64
      %p66 = scmp.ne.s32.totalorder %s52, %s53
      %p67 = scmp.eq.s32.totalorder %s24, 11
      %p68 = por %p66, %p67
      %p70 = scmp.ne.s32.totalorder %s53, %s69
      %p71 = scmp.eq.s32.totalorder %s24, 0
      %p72 = por %p70, %p71
      %s73 = ssub.s32 %s27, %s36
      %s74 = ssub.s32 %s26, %s40
      %s75 = sor.u32 %s73, %s74
      %p76 = scmp.eq.s32.totalorder %s75, 0
      %s78 = sadd.s32 %s77, 1
      %s79 = scalar_select %p76, %s77, %s78
      %p82 = pneg %p76
      %p83 = scmp.eq.s32.totalorder %s18, 11
      %p84 = por %p82, %p83
      %p85 = scmp.ne.s32.totalorder %s77, %s80
      %p86 = scmp.eq.s32.totalorder %s18, 0
      %p87 = por %p85, %p86
      %p88 = scmp.ne.s32.totalorder %s77, %s80
      %p89 = scmp.eq.s32.totalorder %s23, 11
      %p90 = por %p88, %p89
      %p91 = scmp.ne.s32.totalorder %s80, %s81
      %p92 = scmp.eq.s32.totalorder %s23, 0
      %p93 = por %p91, %p92
      %p94 = scmp.ne.s32.totalorder %s80, %s81
      %p95 = scmp.eq.s32.totalorder %s24, 11
      %p96 = por %p94, %p95
      %p98 = scmp.ne.s32.totalorder %s81, %s97
      %p99 = scmp.eq.s32.totalorder %s24, 0
      %p100 = por %p98, %p99
      %s101 = ssub.s32 %s26, %s40
      %p102 = scmp.eq.s32.totalorder %s101, 0
      %s104 = sadd.s32 %s103, 1
      %s105 = scalar_select %p102, %s103, %s104
      %p108 = pneg %p102
      %p109 = scmp.eq.s32.totalorder %s18, 11
      %p110 = por %p108, %p109
      %p111 = scmp.ne.s32.totalorder %s103, %s106
      %p112 = scmp.eq.s32.totalorder %s18, 0
      %p113 = por %p111, %p112
      %p114 = scmp.ne.s32.totalorder %s103, %s106
      %p115 = scmp.eq.s32.totalorder %s23, 11
      %p116 = por %p114, %p115
      %p117 = scmp.ne.s32.totalorder %s106, %s107
      %p118 = scmp.eq.s32.totalorder %s23, 0
      %p119 = por %p117, %p118
      %p120 = scmp.ne.s32.totalorder %s106, %s107
      %p121 = scmp.eq.s32.totalorder %s24, 11
      %p122 = por %p120, %p121
      %p124 = scmp.ne.s32.totalorder %s107, %s123
      %p125 = scmp.eq.s32.totalorder %s24, 0
      %p126 = por %p124, %p125
      %s127 = ssub.s32 %s25, %s44
      %s128 = ssub.s32 %s26, %s40
      %s129 = sor.u32 %s127, %s128
      %p130 = scmp.eq.s32.totalorder %s129, 0
      %s132 = sadd.s32 %s131, 1
      %s133 = scalar_select %p130, %s131, %s132
      %p136 = pneg %p130
      %p137 = scmp.eq.s32.totalorder %s18, 11
      %p138 = por %p136, %p137
      %p139 = scmp.ne.s32.totalorder %s131, %s134
      %p140 = scmp.eq.s32.totalorder %s18, 0
      %p141 = por %p139, %p140
      %p142 = scmp.ne.s32.totalorder %s131, %s134
      %p143 = scmp.eq.s32.totalorder %s23, 11
      %p144 = por %p142, %p143
      %p145 = scmp.ne.s32.totalorder %s134, %s135
      %p146 = scmp.eq.s32.totalorder %s23, 0
      %p147 = por %p145, %p146
      %p148 = scmp.ne.s32.totalorder %s134, %s135
      %p149 = scmp.eq.s32.totalorder %s24, 11
      %p150 = por %p148, %p149
      %p152 = scmp.ne.s32.totalorder %s135, %s151
      %p153 = scmp.eq.s32.totalorder %s24, 0
      %p154 = por %p152, %p153
      %p155 = scmp.le.s32.totalorder 1, %s18
      %p156 = scmp.lt.s32.totalorder %s18, 13
      %p157 = pnand %p155, %p156
      %p158 = pneg %p157
      // Predicated region
      $region9: #{tpu_custom_call.1} parent=5 // pred_check
        _
      $region10: #{tpu_custom_call.1} parent=5 // pred_check_branch
        %160 = sbr.rel (%p157) target = $region12
      $region11: #{tpu_custom_call.1} parent=5 // pred_region
        %s161 = ssub.s32 %s18, 1
      $region12: #{tpu_custom_call.1} parent=5 // pred_fallthru
        _
      %p162 = scmp.lt.s32.totalorder %s18, 12
      // Predicated region
      $region13: #{tpu_custom_call.1} parent=5 // pred_check
        %p163 = pneg %p162
      $region14: #{tpu_custom_call.1} parent=5 // pred_check_branch
        %165 = sbr.rel (%p163) target = $region16
      $region15: #{tpu_custom_call.1} parent=5 // pred_region
        // Predicated region
        $region17: #{tpu_custom_call.1} parent=15 // pred_check
          %p166 = pneg %p59
        $region18: #{tpu_custom_call.1} parent=15 // pred_check_branch
          %168 = sbr.rel (%p166) target = $region20
        $region19: #{tpu_custom_call.1} parent=15 // pred_region
          %s169 = sand.u32 %s49, 1
          %s170 = scalar_lea.sflag [#allocation4], %s169
          %s171 = sand.u32 %s49, 1
          %s172 = smul.addr %s171, 256
          %s173 = scalar_lea.vmem [#allocation3], %s172
          %s174 = smul.u32 32, %s25
          %s175 = smul.u32 2, %s27
          %177 = vsyncadd %s170, 0
          %s178 = smul.addr %s174, 4
          %s179 = sadd.s32 %s175, %s178
          %s180 = smul.addr %s179, 4
          %s181 = scalar_lea.hbm %s0, %s180
          %s182 = sshll.u32 %s181, 4
          %s183 = int_to_ptr.hbm [resolvable:$true] %s182
          %s184 = sshll.u32 %s173, 4
          %s185 = int_to_ptr.vmem [resolvable:$true] %s184
          %190 = dma.hbm_to_vmem [thread:$0]  %s183, 4096, %s185, %s170, 256, 128, 8
        $region20: #{tpu_custom_call.1} parent=15 // pred_fallthru
          _
        // Predicated region
        $region21: #{tpu_custom_call.1} parent=15 // pred_check
          %p191 = pneg %p87
        $region22: #{tpu_custom_call.1} parent=15 // pred_check_branch
          %193 = sbr.rel (%p191) target = $region24
        $region23: #{tpu_custom_call.1} parent=15 // pred_region
          %s194 = sand.u32 %s18, 1
          %s195 = scalar_lea.sflag [#allocation7], %s194
          %s196 = sand.u32 %s77, 1
          %s197 = smul.addr %s196, 512
          %s198 = scalar_lea.vmem [#allocation6], %s197
          %s199 = smul.u32 32, %s27
          %s200 = smul.u32 4, %s26
          %202 = vsyncadd %s195, 0
          %s203 = smul.addr %s199, 12
          %s204 = sadd.s32 %s200, %s203
          %s205 = smul.addr %s204, 4
          %s206 = scalar_lea.hbm %s1, %s205
          %s207 = sshll.u32 %s206, 4
          %s208 = int_to_ptr.hbm [resolvable:$true] %s207
          %s209 = sshll.u32 %s198, 4
          %s210 = int_to_ptr.vmem [resolvable:$true] %s209
          %215 = dma.hbm_to_vmem [thread:$0]  %s208, 8192, %s210, %s195, 768, 256, 16
        $region24: #{tpu_custom_call.1} parent=15 // pred_fallthru
          _
        // Predicated region
        $region25: #{tpu_custom_call.1} parent=15 // pred_check
          %p216 = pneg %p113
        $region26: #{tpu_custom_call.1} parent=15 // pred_check_branch
          %218 = sbr.rel (%p216) target = $region28
        $region27: #{tpu_custom_call.1} parent=15 // pred_region
          %s219 = sand.u32 %s18, 1
          %s220 = scalar_lea.sflag [#allocation7], %s219
          %s221 = sand.u32 %s103, 1
          %s222 = smul.addr %s221, 4
          %s223 = scalar_lea.vmem [#allocation8], %s222
          %s224 = smul.u32 4, %s26
          %226 = vsyncadd %s220, 0
          %s227 = scalar_lea.hbm %s2, %s224
          %s229 = sshll.u32 %s227, 4
          %s230 = int_to_ptr.hbm [resolvable:$true] %s229
          %s231 = sshll.u32 %s223, 4
          %s232 = int_to_ptr.vmem [resolvable:$true] %s231
          %234 = dma.hbm_to_vmem [thread:$0]  %s230, 64, %s232, %s220
        $region28: #{tpu_custom_call.1} parent=15 // pred_fallthru
          _
      $region16: #{tpu_custom_call.1} parent=5 // pred_fallthru
        _
      %p235 = scmp.le.s32.totalorder 1, %s18
      %p236 = scmp.lt.s32.totalorder %s18, 13
      %p237 = pnand %p235, %p236
      %p238 = pneg %p237
      // Predicated region
      $region29: #{tpu_custom_call.1} parent=5 // pred_check
        _
      $region30: #{tpu_custom_call.1} parent=5 // pred_check_branch
        %240 = sbr.rel (%p237) target = $region32
      $region31: #{tpu_custom_call.1} parent=5 // pred_region
        %s241 = ssub.s32 %s18, 1
        %s242 = sand.u32 %s52, 1
        %s243 = scalar_lea.sflag [#allocation4], %s242
        %s244 = sand.u32 %s52, 1
        %s245 = smul.addr %s244, 256
        %s246 = scalar_lea.vmem [#allocation3], %s245
        // Predicated region
        $region33: #{tpu_custom_call.1} parent=31 // pred_check
          %p247 = pneg %p65
        $region34: #{tpu_custom_call.1} parent=31 // pred_check_branch
          %249 = sbr.rel (%p247) target = $region36
        $region35: #{tpu_custom_call.1} parent=31 // pred_region
          %251 = dma.done %s243, 4096
        $region36: #{tpu_custom_call.1} parent=31 // pred_fallthru
          _
        %s252 = sand.u32 %s23, 1
        %s253 = scalar_lea.sflag [#allocation7], %s252
        %s254 = sand.u32 %s80, 1
        %s255 = smul.addr %s254, 512
        %s256 = scalar_lea.vmem [#allocation6], %s255
        // Predicated region
        $region37: #{tpu_custom_call.1} parent=31 // pred_check
          %p257 = pneg %p93
        $region38: #{tpu_custom_call.1} parent=31 // pred_check_branch
          %259 = sbr.rel (%p257) target = $region40
        $region39: #{tpu_custom_call.1} parent=31 // pred_region
          %261 = dma.done %s253, 8192
        $region40: #{tpu_custom_call.1} parent=31 // pred_fallthru
          _
        %s262 = sand.u32 %s23, 1
        %s263 = scalar_lea.sflag [#allocation7], %s262
        %s264 = sand.u32 %s106, 1
        %s265 = smul.addr %s264, 4
        %s266 = scalar_lea.vmem [#allocation8], %s265
        // Predicated region
        $region41: #{tpu_custom_call.1} parent=31 // pred_check
          %p267 = pneg %p119
        $region42: #{tpu_custom_call.1} parent=31 // pred_check_branch
          %269 = sbr.rel (%p267) target = $region44
        $region43: #{tpu_custom_call.1} parent=31 // pred_region
          %271 = dma.done %s263, 64
        $region44: #{tpu_custom_call.1} parent=31 // pred_fallthru
          _
        %s272 = sand.u32 %s52, 1
        %s273 = scalar_lea.sflag [#allocation4], %s272
        %s274 = sand.u32 %s52, 1
        %s275 = smul.addr %s274, 256
        %s276 = scalar_lea.vmem [#allocation3], %s275
        %p277 = pneg %p65
        %p278 = pneg %p62
        %s279 = sand.u32 %s23, 1
        %s280 = scalar_lea.sflag [#allocation7], %s279
        %s281 = sand.u32 %s80, 1
        %s282 = smul.addr %s281, 512
        %s283 = scalar_lea.vmem [#allocation6], %s282
        %p284 = pneg %p93
        %p285 = pneg %p90
        %s286 = sand.u32 %s23, 1
        %s287 = scalar_lea.sflag [#allocation7], %s286
        %s288 = sand.u32 %s106, 1
        %s289 = smul.addr %s288, 4
        %s290 = scalar_lea.vmem [#allocation8], %s289
        %p291 = pneg %p119
        %p292 = pneg %p116
        %p293 = pneg %p147
        %p294 = pneg %p144
        %s295 = sand.u32 %s134, 1
        %s296 = scalar_lea.sflag [#allocation5], %s295
        %s297 = sand.u32 %s134, 1
        %s298 = smul.addr %s297, 512
        %s299 = scalar_lea.vmem [#allocation9], %s298
        %s300 = smul.u32 32, %s28
        %s301 = smul.u32 2, %s30
        %s302 = smul.u32 32, %s30
        %s303 = smul.u32 4, %s29
        %s304 = smul.u32 4, %s29
        %s305 = smul.u32 32, %s28
        %s306 = smul.u32 4, %s29
        %p307 = scmp.eq.s32.totalorder %s30, 0
        // Predicated region
        $region45: #{tpu_custom_call.1} parent=31 // pred_check
          %p308 = pneg %p307
        $region46: #{tpu_custom_call.1} parent=31 // pred_check_branch
          %310 = sbr.rel (%p308) target = $region48
        $region47: #{tpu_custom_call.1} parent=31 // pred_region
          %311 = vst [vmem:[#allocation2] sm:$0xff] 0.0
          %312 = vst [vmem:[#allocation2 + $0x8] sm:$0xff] 0.0
          %313 = vst [vmem:[#allocation2 + $0x10] sm:$0xff] 0.0
          %314 = vst [vmem:[#allocation2 + $0x18] sm:$0xff] 0.0
          %315 = vst [vmem:[#allocation2 + $0x20] sm:$0xff] 0.0
          %316 = vst [vmem:[#allocation2 + $0x28] sm:$0xff] 0.0
          %317 = vst [vmem:[#allocation2 + $0x30] sm:$0xff] 0.0
          %318 = vst [vmem:[#allocation2 + $0x38] sm:$0xff] 0.0
          %319 = vst [vmem:[#allocation2 + $0x40] sm:$0xff] 0.0
          %320 = vst [vmem:[#allocation2 + $0x48] sm:$0xff] 0.0
          %321 = vst [vmem:[#allocation2 + $0x50] sm:$0xff] 0.0
          %322 = vst [vmem:[#allocation2 + $0x58] sm:$0xff] 0.0
          %323 = vst [vmem:[#allocation2 + $0x60] sm:$0xff] 0.0
          %324 = vst [vmem:[#allocation2 + $0x68] sm:$0xff] 0.0
          %325 = vst [vmem:[#allocation2 + $0x70] sm:$0xff] 0.0
          %326 = vst [vmem:[#allocation2 + $0x78] sm:$0xff] 0.0
          %327 = vst [vmem:[#allocation2 + $0x80] sm:$0xff] 0.0
          %328 = vst [vmem:[#allocation2 + $0x88] sm:$0xff] 0.0
          %329 = vst [vmem:[#allocation2 + $0x90] sm:$0xff] 0.0
          %330 = vst [vmem:[#allocation2 + $0x98] sm:$0xff] 0.0
          %331 = vst [vmem:[#allocation2 + $0xa0] sm:$0xff] 0.0
          %332 = vst [vmem:[#allocation2 + $0xa8] sm:$0xff] 0.0
          %333 = vst [vmem:[#allocation2 + $0xb0] sm:$0xff] 0.0
          %334 = vst [vmem:[#allocation2 + $0xb8] sm:$0xff] 0.0
          %335 = vst [vmem:[#allocation2 + $0xc0] sm:$0xff] 0.0
          %336 = vst [vmem:[#allocation2 + $0xc8] sm:$0xff] 0.0
          %337 = vst [vmem:[#allocation2 + $0xd0] sm:$0xff] 0.0
          %338 = vst [vmem:[#allocation2 + $0xd8] sm:$0xff] 0.0
          %339 = vst [vmem:[#allocation2 + $0xe0] sm:$0xff] 0.0
          %340 = vst [vmem:[#allocation2 + $0xe8] sm:$0xff] 0.0
          %341 = vst [vmem:[#allocation2 + $0xf0] sm:$0xff] 0.0
          %342 = vst [vmem:[#allocation2 + $0xf8] sm:$0xff] 0.0
          %343 = vst [vmem:[#allocation2 + $0x100] sm:$0xff] 0.0
          %344 = vst [vmem:[#allocation2 + $0x108] sm:$0xff] 0.0
          %345 = vst [vmem:[#allocation2 + $0x110] sm:$0xff] 0.0
          %346 = vst [vmem:[#allocation2 + $0x118] sm:$0xff] 0.0
          %347 = vst [vmem:[#allocation2 + $0x120] sm:$0xff] 0.0
          %348 = vst [vmem:[#allocation2 + $0x128] sm:$0xff] 0.0
          %349 = vst [vmem:[#allocation2 + $0x130] sm:$0xff] 0.0
          %350 = vst [vmem:[#allocation2 + $0x138] sm:$0xff] 0.0
          %351 = vst [vmem:[#allocation2 + $0x140] sm:$0xff] 0.0
          %352 = vst [vmem:[#allocation2 + $0x148] sm:$0xff] 0.0
          %353 = vst [vmem:[#allocation2 + $0x150] sm:$0xff] 0.0
          %354 = vst [vmem:[#allocation2 + $0x158] sm:$0xff] 0.0
          %355 = vst [vmem:[#allocation2 + $0x160] sm:$0xff] 0.0
          %356 = vst [vmem:[#allocation2 + $0x168] sm:$0xff] 0.0
          %357 = vst [vmem:[#allocation2 + $0x170] sm:$0xff] 0.0
          %358 = vst [vmem:[#allocation2 + $0x178] sm:$0xff] 0.0
          %359 = vst [vmem:[#allocation2 + $0x180] sm:$0xff] 0.0
          %360 = vst [vmem:[#allocation2 + $0x188] sm:$0xff] 0.0
          %361 = vst [vmem:[#allocation2 + $0x190] sm:$0xff] 0.0
          %362 = vst [vmem:[#allocation2 + $0x198] sm:$0xff] 0.0
          %363 = vst [vmem:[#allocation2 + $0x1a0] sm:$0xff] 0.0
          %364 = vst [vmem:[#allocation2 + $0x1a8] sm:$0xff] 0.0
          %365 = vst [vmem:[#allocation2 + $0x1b0] sm:$0xff] 0.0
          %366 = vst [vmem:[#allocation2 + $0x1b8] sm:$0xff] 0.0
          %367 = vst [vmem:[#allocation2 + $0x1c0] sm:$0xff] 0.0
          %368 = vst [vmem:[#allocation2 + $0x1c8] sm:$0xff] 0.0
          %369 = vst [vmem:[#allocation2 + $0x1d0] sm:$0xff] 0.0
          %370 = vst [vmem:[#allocation2 + $0x1d8] sm:$0xff] 0.0
          %371 = vst [vmem:[#allocation2 + $0x1e0] sm:$0xff] 0.0
          %372 = vst [vmem:[#allocation2 + $0x1e8] sm:$0xff] 0.0
          %373 = vst [vmem:[#allocation2 + $0x1f0] sm:$0xff] 0.0
          %374 = vst [vmem:[#allocation2 + $0x1f8] sm:$0xff] 0.0
          %375 = vst [vmem:[#allocation2 + $0x200] sm:$0xff] 0.0
          %376 = vst [vmem:[#allocation2 + $0x208] sm:$0xff] 0.0
          %377 = vst [vmem:[#allocation2 + $0x210] sm:$0xff] 0.0
          %378 = vst [vmem:[#allocation2 + $0x218] sm:$0xff] 0.0
          %379 = vst [vmem:[#allocation2 + $0x220] sm:$0xff] 0.0
          %380 = vst [vmem:[#allocation2 + $0x228] sm:$0xff] 0.0
          %381 = vst [vmem:[#allocation2 + $0x230] sm:$0xff] 0.0
          %382 = vst [vmem:[#allocation2 + $0x238] sm:$0xff] 0.0
          %383 = vst [vmem:[#allocation2 + $0x240] sm:$0xff] 0.0
          %384 = vst [vmem:[#allocation2 + $0x248] sm:$0xff] 0.0
          %385 = vst [vmem:[#allocation2 + $0x250] sm:$0xff] 0.0
          %386 = vst [vmem:[#allocation2 + $0x258] sm:$0xff] 0.0
          %387 = vst [vmem:[#allocation2 + $0x260] sm:$0xff] 0.0
          %388 = vst [vmem:[#allocation2 + $0x268] sm:$0xff] 0.0
          %389 = vst [vmem:[#allocation2 + $0x270] sm:$0xff] 0.0
          %390 = vst [vmem:[#allocation2 + $0x278] sm:$0xff] 0.0
          %391 = vst [vmem:[#allocation2 + $0x280] sm:$0xff] 0.0
          %392 = vst [vmem:[#allocation2 + $0x288] sm:$0xff] 0.0
          %393 = vst [vmem:[#allocation2 + $0x290] sm:$0xff] 0.0
          %394 = vst [vmem:[#allocation2 + $0x298] sm:$0xff] 0.0
          %395 = vst [vmem:[#allocation2 + $0x2a0] sm:$0xff] 0.0
          %396 = vst [vmem:[#allocation2 + $0x2a8] sm:$0xff] 0.0
          %397 = vst [vmem:[#allocation2 + $0x2b0] sm:$0xff] 0.0
          %398 = vst [vmem:[#allocation2 + $0x2b8] sm:$0xff] 0.0
          %399 = vst [vmem:[#allocation2 + $0x2c0] sm:$0xff] 0.0
          %400 = vst [vmem:[#allocation2 + $0x2c8] sm:$0xff] 0.0
          %401 = vst [vmem:[#allocation2 + $0x2d0] sm:$0xff] 0.0
          %402 = vst [vmem:[#allocation2 + $0x2d8] sm:$0xff] 0.0
          %403 = vst [vmem:[#allocation2 + $0x2e0] sm:$0xff] 0.0
          %404 = vst [vmem:[#allocation2 + $0x2e8] sm:$0xff] 0.0
          %405 = vst [vmem:[#allocation2 + $0x2f0] sm:$0xff] 0.0
          %406 = vst [vmem:[#allocation2 + $0x2f8] sm:$0xff] 0.0
          %407 = vst [vmem:[#allocation2 + $0x300] sm:$0xff] 0.0
          %408 = vst [vmem:[#allocation2 + $0x308] sm:$0xff] 0.0
          %409 = vst [vmem:[#allocation2 + $0x310] sm:$0xff] 0.0
          %410 = vst [vmem:[#allocation2 + $0x318] sm:$0xff] 0.0
          %411 = vst [vmem:[#allocation2 + $0x320] sm:$0xff] 0.0
          %412 = vst [vmem:[#allocation2 + $0x328] sm:$0xff] 0.0
          %413 = vst [vmem:[#allocation2 + $0x330] sm:$0xff] 0.0
          %414 = vst [vmem:[#allocation2 + $0x338] sm:$0xff] 0.0
          %415 = vst [vmem:[#allocation2 + $0x340] sm:$0xff] 0.0
          %416 = vst [vmem:[#allocation2 + $0x348] sm:$0xff] 0.0
          %417 = vst [vmem:[#allocation2 + $0x350] sm:$0xff] 0.0
          %418 = vst [vmem:[#allocation2 + $0x358] sm:$0xff] 0.0
          %419 = vst [vmem:[#allocation2 + $0x360] sm:$0xff] 0.0
          %420 = vst [vmem:[#allocation2 + $0x368] sm:$0xff] 0.0
          %421 = vst [vmem:[#allocation2 + $0x370] sm:$0xff] 0.0
          %422 = vst [vmem:[#allocation2 + $0x378] sm:$0xff] 0.0
          %423 = vst [vmem:[#allocation2 + $0x380] sm:$0xff] 0.0
          %424 = vst [vmem:[#allocation2 + $0x388] sm:$0xff] 0.0
          %425 = vst [vmem:[#allocation2 + $0x390] sm:$0xff] 0.0
          %426 = vst [vmem:[#allocation2 + $0x398] sm:$0xff] 0.0
          %427 = vst [vmem:[#allocation2 + $0x3a0] sm:$0xff] 0.0
          %428 = vst [vmem:[#allocation2 + $0x3a8] sm:$0xff] 0.0
          %429 = vst [vmem:[#allocation2 + $0x3b0] sm:$0xff] 0.0
          %430 = vst [vmem:[#allocation2 + $0x3b8] sm:$0xff] 0.0
          %431 = vst [vmem:[#allocation2 + $0x3c0] sm:$0xff] 0.0
          %432 = vst [vmem:[#allocation2 + $0x3c8] sm:$0xff] 0.0
          %433 = vst [vmem:[#allocation2 + $0x3d0] sm:$0xff] 0.0
          %434 = vst [vmem:[#allocation2 + $0x3d8] sm:$0xff] 0.0
          %435 = vst [vmem:[#allocation2 + $0x3e0] sm:$0xff] 0.0
          %436 = vst [vmem:[#allocation2 + $0x3e8] sm:$0xff] 0.0
          %437 = vst [vmem:[#allocation2 + $0x3f0] sm:$0xff] 0.0
          %438 = vst [vmem:[#allocation2 + $0x3f8] sm:$0xff] 0.0
        $region48: #{tpu_custom_call.1} parent=31 // pred_fallthru
          _
        %v439 = vld [vmem:[#allocation2] sm:$0xff]
        %v440 = vld [vmem:[#allocation2 + $0x8] sm:$0xff]
        %v441 = vld [vmem:[#allocation2 + $0x10] sm:$0xff]
        %v442 = vld [vmem:[#allocation2 + $0x18] sm:$0xff]
        %v443 = vld [vmem:[#allocation2 + $0x20] sm:$0xff]
        %v444 = vld [vmem:[#allocation2 + $0x28] sm:$0xff]
        %v445 = vld [vmem:[#allocation2 + $0x30] sm:$0xff]
        %v446 = vld [vmem:[#allocation2 + $0x38] sm:$0xff]
        %v447 = vld [vmem:[#allocation2 + $0x40] sm:$0xff]
        %v448 = vld [vmem:[#allocation2 + $0x48] sm:$0xff]
        %v449 = vld [vmem:[#allocation2 + $0x50] sm:$0xff]
        %v450 = vld [vmem:[#allocation2 + $0x58] sm:$0xff]
        %v451 = vld [vmem:[#allocation2 + $0x60] sm:$0xff]
        %v452 = vld [vmem:[#allocation2 + $0x68] sm:$0xff]
        %v453 = vld [vmem:[#allocation2 + $0x70] sm:$0xff]
        %v454 = vld [vmem:[#allocation2 + $0x78] sm:$0xff]
        %v455 = vld [vmem:[#allocation2 + $0x80] sm:$0xff]
        %v456 = vld [vmem:[#allocation2 + $0x88] sm:$0xff]
        %v457 = vld [vmem:[#allocation2 + $0x90] sm:$0xff]
        %v458 = vld [vmem:[#allocation2 + $0x98] sm:$0xff]
        %v459 = vld [vmem:[#allocation2 + $0xa0] sm:$0xff]
        %v460 = vld [vmem:[#allocation2 + $0xa8] sm:$0xff]
        %v461 = vld [vmem:[#allocation2 + $0xb0] sm:$0xff]
        %v462 = vld [vmem:[#allocation2 + $0xb8] sm:$0xff]
        %v463 = vld [vmem:[#allocation2 + $0xc0] sm:$0xff]
        %v464 = vld [vmem:[#allocation2 + $0xc8] sm:$0xff]
        %v465 = vld [vmem:[#allocation2 + $0xd0] sm:$0xff]
        %v466 = vld [vmem:[#allocation2 + $0xd8] sm:$0xff]
        %v467 = vld [vmem:[#allocation2 + $0xe0] sm:$0xff]
        %v468 = vld [vmem:[#allocation2 + $0xe8] sm:$0xff]
        %v469 = vld [vmem:[#allocation2 + $0xf0] sm:$0xff]
        %v470 = vld [vmem:[#allocation2 + $0xf8] sm:$0xff]
        %v471 = vld [vmem:[#allocation2 + $0x100] sm:$0xff]
        %v472 = vld [vmem:[#allocation2 + $0x108] sm:$0xff]
        %v473 = vld [vmem:[#allocation2 + $0x110] sm:$0xff]
        %v474 = vld [vmem:[#allocation2 + $0x118] sm:$0xff]
        %v475 = vld [vmem:[#allocation2 + $0x120] sm:$0xff]
        %v476 = vld [vmem:[#allocation2 + $0x128] sm:$0xff]
        %v477 = vld [vmem:[#allocation2 + $0x130] sm:$0xff]
        %v478 = vld [vmem:[#allocation2 + $0x138] sm:$0xff]
        %v479 = vld [vmem:[#allocation2 + $0x140] sm:$0xff]
        %v480 = vld [vmem:[#allocation2 + $0x148] sm:$0xff]
        %v481 = vld [vmem:[#allocation2 + $0x150] sm:$0xff]
        %v482 = vld [vmem:[#allocation2 + $0x158] sm:$0xff]
        %v483 = vld [vmem:[#allocation2 + $0x160] sm:$0xff]
        %v484 = vld [vmem:[#allocation2 + $0x168] sm:$0xff]
        %v485 = vld [vmem:[#allocation2 + $0x170] sm:$0xff]
        %v486 = vld [vmem:[#allocation2 + $0x178] sm:$0xff]
        %v487 = vld [vmem:[#allocation2 + $0x180] sm:$0xff]
        %v488 = vld [vmem:[#allocation2 + $0x188] sm:$0xff]
        %v489 = vld [vmem:[#allocation2 + $0x190] sm:$0xff]
        %v490 = vld [vmem:[#allocation2 + $0x198] sm:$0xff]
        %v491 = vld [vmem:[#allocation2 + $0x1a0] sm:$0xff]
        %v492 = vld [vmem:[#allocation2 + $0x1a8] sm:$0xff]
        %v493 = vld [vmem:[#allocation2 + $0x1b0] sm:$0xff]
        %v494 = vld [vmem:[#allocation2 + $0x1b8] sm:$0xff]
        %v495 = vld [vmem:[#allocation2 + $0x1c0] sm:$0xff]
        %v496 = vld [vmem:[#allocation2 + $0x1c8] sm:$0xff]
        %v497 = vld [vmem:[#allocation2 + $0x1d0] sm:$0xff]
        %v498 = vld [vmem:[#allocation2 + $0x1d8] sm:$0xff]
        %v499 = vld [vmem:[#allocation2 + $0x1e0] sm:$0xff]
        %v500 = vld [vmem:[#allocation2 + $0x1e8] sm:$0xff]
        %v501 = vld [vmem:[#allocation2 + $0x1f0] sm:$0xff]
        %v502 = vld [vmem:[#allocation2 + $0x1f8] sm:$0xff]
        %v503 = vld [vmem:[#allocation2 + $0x200] sm:$0xff]
        %v504 = vld [vmem:[#allocation2 + $0x208] sm:$0xff]
        %v505 = vld [vmem:[#allocation2 + $0x210] sm:$0xff]
        %v506 = vld [vmem:[#allocation2 + $0x218] sm:$0xff]
        %v507 = vld [vmem:[#allocation2 + $0x220] sm:$0xff]
        %v508 = vld [vmem:[#allocation2 + $0x228] sm:$0xff]
        %v509 = vld [vmem:[#allocation2 + $0x230] sm:$0xff]
        %v510 = vld [vmem:[#allocation2 + $0x238] sm:$0xff]
        %v511 = vld [vmem:[#allocation2 + $0x240] sm:$0xff]
        %v512 = vld [vmem:[#allocation2 + $0x248] sm:$0xff]
        %v513 = vld [vmem:[#allocation2 + $0x250] sm:$0xff]
        %v514 = vld [vmem:[#allocation2 + $0x258] sm:$0xff]
        %v515 = vld [vmem:[#allocation2 + $0x260] sm:$0xff]
        %v516 = vld [vmem:[#allocation2 + $0x268] sm:$0xff]
        %v517 = vld [vmem:[#allocation2 + $0x270] sm:$0xff]
        %v518 = vld [vmem:[#allocation2 + $0x278] sm:$0xff]
        %v519 = vld [vmem:[#allocation2 + $0x280] sm:$0xff]
        %v520 = vld [vmem:[#allocation2 + $0x288] sm:$0xff]
        %v521 = vld [vmem:[#allocation2 + $0x290] sm:$0xff]
        %v522 = vld [vmem:[#allocation2 + $0x298] sm:$0xff]
        %v523 = vld [vmem:[#allocation2 + $0x2a0] sm:$0xff]
        %v524 = vld [vmem:[#allocation2 + $0x2a8] sm:$0xff]
        %v525 = vld [vmem:[#allocation2 + $0x2b0] sm:$0xff]
        %v526 = vld [vmem:[#allocation2 + $0x2b8] sm:$0xff]
        %v527 = vld [vmem:[#allocation2 + $0x2c0] sm:$0xff]
        %v528 = vld [vmem:[#allocation2 + $0x2c8] sm:$0xff]
        %v529 = vld [vmem:[#allocation2 + $0x2d0] sm:$0xff]
        %v530 = vld [vmem:[#allocation2 + $0x2d8] sm:$0xff]
        %v531 = vld [vmem:[#allocation2 + $0x2e0] sm:$0xff]
        %v532 = vld [vmem:[#allocation2 + $0x2e8] sm:$0xff]
        %v533 = vld [vmem:[#allocation2 + $0x2f0] sm:$0xff]
        %v534 = vld [vmem:[#allocation2 + $0x2f8] sm:$0xff]
        %v535 = vld [vmem:[#allocation2 + $0x300] sm:$0xff]
        %v536 = vld [vmem:[#allocation2 + $0x308] sm:$0xff]
        %v537 = vld [vmem:[#allocation2 + $0x310] sm:$0xff]
        %v538 = vld [vmem:[#allocation2 + $0x318] sm:$0xff]
        %v539 = vld [vmem:[#allocation2 + $0x320] sm:$0xff]
        %v540 = vld [vmem:[#allocation2 + $0x328] sm:$0xff]
        %v541 = vld [vmem:[#allocation2 + $0x330] sm:$0xff]
        %v542 = vld [vmem:[#allocation2 + $0x338] sm:$0xff]
        %v543 = vld [vmem:[#allocation2 + $0x340] sm:$0xff]
        %v544 = vld [vmem:[#allocation2 + $0x348] sm:$0xff]
        %v545 = vld [vmem:[#allocation2 + $0x350] sm:$0xff]
        %v546 = vld [vmem:[#allocation2 + $0x358] sm:$0xff]
        %v547 = vld [vmem:[#allocation2 + $0x360] sm:$0xff]
        %v548 = vld [vmem:[#allocation2 + $0x368] sm:$0xff]
        %v549 = vld [vmem:[#allocation2 + $0x370] sm:$0xff]
        %v550 = vld [vmem:[#allocation2 + $0x378] sm:$0xff]
        %v551 = vld [vmem:[#allocation2 + $0x380] sm:$0xff]
        %v552 = vld [vmem:[#allocation2 + $0x388] sm:$0xff]
        %v553 = vld [vmem:[#allocation2 + $0x390] sm:$0xff]
        %v554 = vld [vmem:[#allocation2 + $0x398] sm:$0xff]
        %v555 = vld [vmem:[#allocation2 + $0x3a0] sm:$0xff]
        %v556 = vld [vmem:[#allocation2 + $0x3a8] sm:$0xff]
        %v557 = vld [vmem:[#allocation2 + $0x3b0] sm:$0xff]
        %v558 = vld [vmem:[#allocation2 + $0x3b8] sm:$0xff]
        %v559 = vld [vmem:[#allocation2 + $0x3c0] sm:$0xff]
        %v560 = vld [vmem:[#allocation2 + $0x3c8] sm:$0xff]
        %v561 = vld [vmem:[#allocation2 + $0x3d0] sm:$0xff]
        %v562 = vld [vmem:[#allocation2 + $0x3d8] sm:$0xff]
        %v563 = vld [vmem:[#allocation2 + $0x3e0] sm:$0xff]
        %v564 = vld [vmem:[#allocation2 + $0x3e8] sm:$0xff]
        %v565 = vld [vmem:[#allocation2 + $0x3f0] sm:$0xff]
        %v566 = vld [vmem:[#allocation2 + $0x3f8] sm:$0xff]
        %v567 = vld [vmem:[%s246] sm:$0xff]
        %v568 = vld [vmem:[%s246 + $0x8] sm:$0xff]
        %v569 = vld [vmem:[%s246 + $0x10] sm:$0xff]
        %v570 = vld [vmem:[%s246 + $0x18] sm:$0xff]
        %v571 = vld [vmem:[%s246 + $0x20] sm:$0xff]
        %v572 = vld [vmem:[%s246 + $0x28] sm:$0xff]
        %v573 = vld [vmem:[%s246 + $0x30] sm:$0xff]
        %v574 = vld [vmem:[%s246 + $0x38] sm:$0xff]
        %v575 = vld [vmem:[%s246 + $0x40] sm:$0xff]
        %v576 = vld [vmem:[%s246 + $0x48] sm:$0xff]
        %v577 = vld [vmem:[%s246 + $0x50] sm:$0xff]
        %v578 = vld [vmem:[%s246 + $0x58] sm:$0xff]
        %v579 = vld [vmem:[%s246 + $0x60] sm:$0xff]
        %v580 = vld [vmem:[%s246 + $0x68] sm:$0xff]
        %v581 = vld [vmem:[%s246 + $0x70] sm:$0xff]
        %v582 = vld [vmem:[%s246 + $0x78] sm:$0xff]
        %v583 = vld [vmem:[%s246 + $0x80] sm:$0xff]
        %v584 = vld [vmem:[%s246 + $0x88] sm:$0xff]
        %v585 = vld [vmem:[%s246 + $0x90] sm:$0xff]
        %v586 = vld [vmem:[%s246 + $0x98] sm:$0xff]
        %v587 = vld [vmem:[%s246 + $0xa0] sm:$0xff]
        %v588 = vld [vmem:[%s246 + $0xa8] sm:$0xff]
        %v589 = vld [vmem:[%s246 + $0xb0] sm:$0xff]
        %v590 = vld [vmem:[%s246 + $0xb8] sm:$0xff]
        %v591 = vld [vmem:[%s246 + $0xc0] sm:$0xff]
        %v592 = vld [vmem:[%s246 + $0xc8] sm:$0xff]
        %v593 = vld [vmem:[%s246 + $0xd0] sm:$0xff]
        %v594 = vld [vmem:[%s246 + $0xd8] sm:$0xff]
        %v595 = vld [vmem:[%s246 + $0xe0] sm:$0xff]
        %v596 = vld [vmem:[%s246 + $0xe8] sm:$0xff]
        %v597 = vld [vmem:[%s246 + $0xf0] sm:$0xff]
        %v598 = vld [vmem:[%s246 + $0xf8] sm:$0xff]
        %v599 = vld [vmem:[%s256] sm:$0xff]
        %v600 = vld [vmem:[%s256 + $0x8] sm:$0xff]
        %v601 = vld [vmem:[%s256 + $0x10] sm:$0xff]
        %v602 = vld [vmem:[%s256 + $0x18] sm:$0xff]
        %v603 = vld [vmem:[%s256 + $0x20] sm:$0xff]
        %v604 = vld [vmem:[%s256 + $0x28] sm:$0xff]
        %v605 = vld [vmem:[%s256 + $0x30] sm:$0xff]
        %v606 = vld [vmem:[%s256 + $0x38] sm:$0xff]
        %v607 = vld [vmem:[%s256 + $0x40] sm:$0xff]
        %v608 = vld [vmem:[%s256 + $0x48] sm:$0xff]
        %v609 = vld [vmem:[%s256 + $0x50] sm:$0xff]
        %v610 = vld [vmem:[%s256 + $0x58] sm:$0xff]
        %v611 = vld [vmem:[%s256 + $0x60] sm:$0xff]
        %v612 = vld [vmem:[%s256 + $0x68] sm:$0xff]
        %v613 = vld [vmem:[%s256 + $0x70] sm:$0xff]
        %v614 = vld [vmem:[%s256 + $0x78] sm:$0xff]
        %v615 = vld [vmem:[%s256 + $0x80] sm:$0xff]
        %v616 = vld [vmem:[%s256 + $0x88] sm:$0xff]
        %v617 = vld [vmem:[%s256 + $0x90] sm:$0xff]
        %v618 = vld [vmem:[%s256 + $0x98] sm:$0xff]
        %v619 = vld [vmem:[%s256 + $0xa0] sm:$0xff]
        %v620 = vld [vmem:[%s256 + $0xa8] sm:$0xff]
        %v621 = vld [vmem:[%s256 + $0xb0] sm:$0xff]
        %v622 = vld [vmem:[%s256 + $0xb8] sm:$0xff]
        %v623 = vld [vmem:[%s256 + $0xc0] sm:$0xff]
        %v624 = vld [vmem:[%s256 + $0xc8] sm:$0xff]
        %v625 = vld [vmem:[%s256 + $0xd0] sm:$0xff]
        %v626 = vld [vmem:[%s256 + $0xd8] sm:$0xff]
        %v627 = vld [vmem:[%s256 + $0xe0] sm:$0xff]
        %v628 = vld [vmem:[%s256 + $0xe8] sm:$0xff]
        %v629 = vld [vmem:[%s256 + $0xf0] sm:$0xff]
        %v630 = vld [vmem:[%s256 + $0xf8] sm:$0xff]
        %v631 = vld [vmem:[%s256 + $0x100] sm:$0xff]
        %v632 = vld [vmem:[%s256 + $0x108] sm:$0xff]
        %v633 = vld [vmem:[%s256 + $0x110] sm:$0xff]
        %v634 = vld [vmem:[%s256 + $0x118] sm:$0xff]
        %v635 = vld [vmem:[%s256 + $0x120] sm:$0xff]
        %v636 = vld [vmem:[%s256 + $0x128] sm:$0xff]
        %v637 = vld [vmem:[%s256 + $0x130] sm:$0xff]
        %v638 = vld [vmem:[%s256 + $0x138] sm:$0xff]
        %v639 = vld [vmem:[%s256 + $0x140] sm:$0xff]
        %v640 = vld [vmem:[%s256 + $0x148] sm:$0xff]
        %v641 = vld [vmem:[%s256 + $0x150] sm:$0xff]
        %v642 = vld [vmem:[%s256 + $0x158] sm:$0xff]
        %v643 = vld [vmem:[%s256 + $0x160] sm:$0xff]
        %v644 = vld [vmem:[%s256 + $0x168] sm:$0xff]
        %v645 = vld [vmem:[%s256 + $0x170] sm:$0xff]
        %v646 = vld [vmem:[%s256 + $0x178] sm:$0xff]
        %v647 = vld [vmem:[%s256 + $0x180] sm:$0xff]
        %v648 = vld [vmem:[%s256 + $0x188] sm:$0xff]
        %v649 = vld [vmem:[%s256 + $0x190] sm:$0xff]
        %v650 = vld [vmem:[%s256 + $0x198] sm:$0xff]
        %v651 = vld [vmem:[%s256 + $0x1a0] sm:$0xff]
        %v652 = vld [vmem:[%s256 + $0x1a8] sm:$0xff]
        %v653 = vld [vmem:[%s256 + $0x1b0] sm:$0xff]
        %v654 = vld [vmem:[%s256 + $0x1b8] sm:$0xff]
        %v655 = vld [vmem:[%s256 + $0x1c0] sm:$0xff]
        %v656 = vld [vmem:[%s256 + $0x1c8] sm:$0xff]
        %v657 = vld [vmem:[%s256 + $0x1d0] sm:$0xff]
        %v658 = vld [vmem:[%s256 + $0x1d8] sm:$0xff]
        %v659 = vld [vmem:[%s256 + $0x1e0] sm:$0xff]
        %v660 = vld [vmem:[%s256 + $0x1e8] sm:$0xff]
        %v661 = vld [vmem:[%s256 + $0x1f0] sm:$0xff]
        %v662 = vld [vmem:[%s256 + $0x1f8] sm:$0xff]
        %v695 = vunpack.c.l.b16 %v567
        %v696 = vunpack.c.h.b16 %v567
        %v697 = vunpack.c.l.b16 %v568
        %v698 = vunpack.c.h.b16 %v568
        %v699 = vunpack.c.l.b16 %v569
        %v700 = vunpack.c.h.b16 %v569
        %v701 = vunpack.c.l.b16 %v570
        %v702 = vunpack.c.h.b16 %v570
        %v703 = vunpack.c.l.b16 %v571
        %v704 = vunpack.c.h.b16 %v571
        %v705 = vunpack.c.l.b16 %v572
        %v706 = vunpack.c.h.b16 %v572
        %v707 = vunpack.c.l.b16 %v573
        %v708 = vunpack.c.h.b16 %v573
        %v709 = vunpack.c.l.b16 %v574
        %v710 = vunpack.c.h.b16 %v574
        %v711 = vunpack.c.l.b16 %v575
        %v712 = vunpack.c.h.b16 %v575
        %v713 = vunpack.c.l.b16 %v576
        %v714 = vunpack.c.h.b16 %v576
        %v715 = vunpack.c.l.b16 %v577
        %v716 = vunpack.c.h.b16 %v577
        %v717 = vunpack.c.l.b16 %v578
        %v718 = vunpack.c.h.b16 %v578
        %v719 = vunpack.c.l.b16 %v579
        %v720 = vunpack.c.h.b16 %v579
        %v721 = vunpack.c.l.b16 %v580
        %v722 = vunpack.c.h.b16 %v580
        %v723 = vunpack.c.l.b16 %v581
        %v724 = vunpack.c.h.b16 %v581
        %v725 = vunpack.c.l.b16 %v582
        %v726 = vunpack.c.h.b16 %v582
        %v727 = vunpack.c.l.b16 %v583
        %v728 = vunpack.c.h.b16 %v583
        %v729 = vunpack.c.l.b16 %v584
        %v730 = vunpack.c.h.b16 %v584
        %v731 = vunpack.c.l.b16 %v585
        %v732 = vunpack.c.h.b16 %v585
        %v733 = vunpack.c.l.b16 %v586
        %v734 = vunpack.c.h.b16 %v586
        %v735 = vunpack.c.l.b16 %v587
        %v736 = vunpack.c.h.b16 %v587
        %v737 = vunpack.c.l.b16 %v588
        %v738 = vunpack.c.h.b16 %v588
        %v739 = vunpack.c.l.b16 %v589
        %v740 = vunpack.c.h.b16 %v589
        %v741 = vunpack.c.l.b16 %v590
        %v742 = vunpack.c.h.b16 %v590
        %v743 = vunpack.c.l.b16 %v591
        %v744 = vunpack.c.h.b16 %v591
        %v745 = vunpack.c.l.b16 %v592
        %v746 = vunpack.c.h.b16 %v592
        %v747 = vunpack.c.l.b16 %v593
        %v748 = vunpack.c.h.b16 %v593
        %v749 = vunpack.c.l.b16 %v594
        %v750 = vunpack.c.h.b16 %v594
        %v751 = vunpack.c.l.b16 %v595
        %v752 = vunpack.c.h.b16 %v595
        %v753 = vunpack.c.l.b16 %v596
        %v754 = vunpack.c.h.b16 %v596
        %v755 = vunpack.c.l.b16 %v597
        %v756 = vunpack.c.h.b16 %v597
        %v757 = vunpack.c.l.b16 %v598
        %v758 = vunpack.c.h.b16 %v598
        %v759 = vpack.c.b16 %v697, %v695
        %v760 = vpack.c.b16 %v698, %v696
        %v761 = vpack.c.b16 %v701, %v699
        %v762 = vpack.c.b16 %v702, %v700
        %v763 = vpack.c.b16 %v705, %v703
        %v764 = vpack.c.b16 %v706, %v704
        %v765 = vpack.c.b16 %v709, %v707
        %v766 = vpack.c.b16 %v710, %v708
        %v767 = vpack.c.b16 %v713, %v711
        %v768 = vpack.c.b16 %v714, %v712
        %v769 = vpack.c.b16 %v717, %v715
        %v770 = vpack.c.b16 %v718, %v716
        %v771 = vpack.c.b16 %v721, %v719
        %v772 = vpack.c.b16 %v722, %v720
        %v773 = vpack.c.b16 %v725, %v723
        %v774 = vpack.c.b16 %v726, %v724
        %v775 = vpack.c.b16 %v729, %v727
        %v776 = vpack.c.b16 %v730, %v728
        %v777 = vpack.c.b16 %v733, %v731
        %v778 = vpack.c.b16 %v734, %v732
        %v779 = vpack.c.b16 %v737, %v735
        %v780 = vpack.c.b16 %v738, %v736
        %v781 = vpack.c.b16 %v741, %v739
        %v782 = vpack.c.b16 %v742, %v740
        %v783 = vpack.c.b16 %v745, %v743
        %v784 = vpack.c.b16 %v746, %v744
        %v785 = vpack.c.b16 %v749, %v747
        %v786 = vpack.c.b16 %v750, %v748
        %v787 = vpack.c.b16 %v753, %v751
        %v788 = vpack.c.b16 %v754, %v752
        %v789 = vpack.c.b16 %v757, %v755
        %v790 = vpack.c.b16 %v758, %v756
        %v887 = vunpack.c.l.b16 %v599
        %v888 = vunpack.c.h.b16 %v599
        %v889 = vunpack.c.l.b16 %v600
        %v890 = vunpack.c.h.b16 %v600
        %v891 = vunpack.c.l.b16 %v601
        %v892 = vunpack.c.h.b16 %v601
        %v893 = vunpack.c.l.b16 %v602
        %v894 = vunpack.c.h.b16 %v602
        %v895 = vunpack.c.l.b16 %v603
        %v896 = vunpack.c.h.b16 %v603
        %v897 = vunpack.c.l.b16 %v604
        %v898 = vunpack.c.h.b16 %v604
        %v899 = vunpack.c.l.b16 %v605
        %v900 = vunpack.c.h.b16 %v605
        %v901 = vunpack.c.l.b16 %v606
        %v902 = vunpack.c.h.b16 %v606
        %v903 = vunpack.c.l.b16 %v607
        %v904 = vunpack.c.h.b16 %v607
        %v905 = vunpack.c.l.b16 %v608
        %v906 = vunpack.c.h.b16 %v608
        %v907 = vunpack.c.l.b16 %v609
        %v908 = vunpack.c.h.b16 %v609
        %v909 = vunpack.c.l.b16 %v610
        %v910 = vunpack.c.h.b16 %v610
        %v911 = vunpack.c.l.b16 %v611
        %v912 = vunpack.c.h.b16 %v611
        %v913 = vunpack.c.l.b16 %v612
        %v914 = vunpack.c.h.b16 %v612
        %v915 = vunpack.c.l.b16 %v613
        %v916 = vunpack.c.h.b16 %v613
        %v917 = vunpack.c.l.b16 %v614
        %v918 = vunpack.c.h.b16 %v614
        %v919 = vunpack.c.l.b16 %v615
        %v920 = vunpack.c.h.b16 %v615
        %v921 = vunpack.c.l.b16 %v616
        %v922 = vunpack.c.h.b16 %v616
        %v923 = vunpack.c.l.b16 %v617
        %v924 = vunpack.c.h.b16 %v617
        %v925 = vunpack.c.l.b16 %v618
        %v926 = vunpack.c.h.b16 %v618
        %v927 = vunpack.c.l.b16 %v619
        %v928 = vunpack.c.h.b16 %v619
        %v929 = vunpack.c.l.b16 %v620
        %v930 = vunpack.c.h.b16 %v620
        %v931 = vunpack.c.l.b16 %v621
        %v932 = vunpack.c.h.b16 %v621
        %v933 = vunpack.c.l.b16 %v622
        %v934 = vunpack.c.h.b16 %v622
        %v935 = vunpack.c.l.b16 %v623
        %v936 = vunpack.c.h.b16 %v623
        %v937 = vunpack.c.l.b16 %v624
        %v938 = vunpack.c.h.b16 %v624
        %v939 = vunpack.c.l.b16 %v625
        %v940 = vunpack.c.h.b16 %v625
        %v941 = vunpack.c.l.b16 %v626
        %v942 = vunpack.c.h.b16 %v626
        %v943 = vunpack.c.l.b16 %v627
        %v944 = vunpack.c.h.b16 %v627
        %v945 = vunpack.c.l.b16 %v628
        %v946 = vunpack.c.h.b16 %v628
        %v947 = vunpack.c.l.b16 %v629
        %v948 = vunpack.c.h.b16 %v629
        %v949 = vunpack.c.l.b16 %v630
        %v950 = vunpack.c.h.b16 %v630
        %v951 = vunpack.c.l.b16 %v631
        %v952 = vunpack.c.h.b16 %v631
        %v953 = vunpack.c.l.b16 %v632
        %v954 = vunpack.c.h.b16 %v632
        %v955 = vunpack.c.l.b16 %v633
        %v956 = vunpack.c.h.b16 %v633
        %v957 = vunpack.c.l.b16 %v634
        %v958 = vunpack.c.h.b16 %v634
        %v959 = vunpack.c.l.b16 %v635
        %v960 = vunpack.c.h.b16 %v635
        %v961 = vunpack.c.l.b16 %v636
        %v962 = vunpack.c.h.b16 %v636
        %v963 = vunpack.c.l.b16 %v637
        %v964 = vunpack.c.h.b16 %v637
        %v965 = vunpack.c.l.b16 %v638
        %v966 = vunpack.c.h.b16 %v638
        %v967 = vunpack.c.l.b16 %v639
        %v968 = vunpack.c.h.b16 %v639
        %v969 = vunpack.c.l.b16 %v640
        %v970 = vunpack.c.h.b16 %v640
        %v971 = vunpack.c.l.b16 %v641
        %v972 = vunpack.c.h.b16 %v641
        %v973 = vunpack.c.l.b16 %v642
        %v974 = vunpack.c.h.b16 %v642
        %v975 = vunpack.c.l.b16 %v643
        %v976 = vunpack.c.h.b16 %v643
        %v977 = vunpack.c.l.b16 %v644
        %v978 = vunpack.c.h.b16 %v644
        %v979 = vunpack.c.l.b16 %v645
        %v980 = vunpack.c.h.b16 %v645
        %v981 = vunpack.c.l.b16 %v646
        %v982 = vunpack.c.h.b16 %v646
        %v983 = vunpack.c.l.b16 %v647
        %v984 = vunpack.c.h.b16 %v647
        %v985 = vunpack.c.l.b16 %v648
        %v986 = vunpack.c.h.b16 %v648
        %v987 = vunpack.c.l.b16 %v649
        %v988 = vunpack.c.h.b16 %v649
        %v989 = vunpack.c.l.b16 %v650
        %v990 = vunpack.c.h.b16 %v650
        %v991 = vunpack.c.l.b16 %v651
        %v992 = vunpack.c.h.b16 %v651
        %v993 = vunpack.c.l.b16 %v652
        %v994 = vunpack.c.h.b16 %v652
        %v995 = vunpack.c.l.b16 %v653
        %v996 = vunpack.c.h.b16 %v653
        %v997 = vunpack.c.l.b16 %v654
        %v998 = vunpack.c.h.b16 %v654
        %v999 = vunpack.c.l.b16 %v655
        %v1000 = vunpack.c.h.b16 %v655
        %v1001 = vunpack.c.l.b16 %v656
        %v1002 = vunpack.c.h.b16 %v656
        %v1003 = vunpack.c.l.b16 %v657
        %v1004 = vunpack.c.h.b16 %v657
        %v1005 = vunpack.c.l.b16 %v658
        %v1006 = vunpack.c.h.b16 %v658
        %v1007 = vunpack.c.l.b16 %v659
        %v1008 = vunpack.c.h.b16 %v659
        %v1009 = vunpack.c.l.b16 %v660
        %v1010 = vunpack.c.h.b16 %v660
        %v1011 = vunpack.c.l.b16 %v661
        %v1012 = vunpack.c.h.b16 %v661
        %v1013 = vunpack.c.l.b16 %v662
        %v1014 = vunpack.c.h.b16 %v662
        %v1015 = vpack.c.b16 %v891, %v887
        %v1016 = vpack.c.b16 %v892, %v888
        %v1017 = vpack.c.b16 %v893, %v889
        %v1018 = vpack.c.b16 %v894, %v890
        %v1019 = vpack.c.b16 %v899, %v895
        %v1020 = vpack.c.b16 %v900, %v896
        %v1021 = vpack.c.b16 %v901, %v897
        %v1022 = vpack.c.b16 %v902, %v898
        %v1023 = vpack.c.b16 %v907, %v903
        %v1024 = vpack.c.b16 %v908, %v904
        %v1025 = vpack.c.b16 %v909, %v905
        %v1026 = vpack.c.b16 %v910, %v906
        %v1027 = vpack.c.b16 %v915, %v911
        %v1028 = vpack.c.b16 %v916, %v912
        %v1029 = vpack.c.b16 %v917, %v913
        %v1030 = vpack.c.b16 %v918, %v914
        %v1031 = vpack.c.b16 %v923, %v919
        %v1032 = vpack.c.b16 %v924, %v920
        %v1033 = vpack.c.b16 %v925, %v921
        %v1034 = vpack.c.b16 %v926, %v922
        %v1035 = vpack.c.b16 %v931, %v927
        %v1036 = vpack.c.b16 %v932, %v928
        %v1037 = vpack.c.b16 %v933, %v929
        %v1038 = vpack.c.b16 %v934, %v930
        %v1039 = vpack.c.b16 %v939, %v935
        %v1040 = vpack.c.b16 %v940, %v936
        %v1041 = vpack.c.b16 %v941, %v937
        %v1042 = vpack.c.b16 %v942, %v938
        %v1043 = vpack.c.b16 %v947, %v943
        %v1044 = vpack.c.b16 %v948, %v944
        %v1045 = vpack.c.b16 %v949, %v945
        %v1046 = vpack.c.b16 %v950, %v946
        %v1047 = vpack.c.b16 %v955, %v951
        %v1048 = vpack.c.b16 %v956, %v952
        %v1049 = vpack.c.b16 %v957, %v953
        %v1050 = vpack.c.b16 %v958, %v954
        %v1051 = vpack.c.b16 %v963, %v959
        %v1052 = vpack.c.b16 %v964, %v960
        %v1053 = vpack.c.b16 %v965, %v961
        %v1054 = vpack.c.b16 %v966, %v962
        %v1055 = vpack.c.b16 %v971, %v967
        %v1056 = vpack.c.b16 %v972, %v968
        %v1057 = vpack.c.b16 %v973, %v969
        %v1058 = vpack.c.b16 %v974, %v970
        %v1059 = vpack.c.b16 %v979, %v975
        %v1060 = vpack.c.b16 %v980, %v976
        %v1061 = vpack.c.b16 %v981, %v977
        %v1062 = vpack.c.b16 %v982, %v978
        %v1063 = vpack.c.b16 %v987, %v983
        %v1064 = vpack.c.b16 %v988, %v984
        %v1065 = vpack.c.b16 %v989, %v985
        %v1066 = vpack.c.b16 %v990, %v986
        %v1067 = vpack.c.b16 %v995, %v991
        %v1068 = vpack.c.b16 %v996, %v992
        %v1069 = vpack.c.b16 %v997, %v993
        %v1070 = vpack.c.b16 %v998, %v994
        %v1071 = vpack.c.b16 %v1003, %v999
        %v1072 = vpack.c.b16 %v1004, %v1000
        %v1073 = vpack.c.b16 %v1005, %v1001
        %v1074 = vpack.c.b16 %v1006, %v1002
        %v1075 = vpack.c.b16 %v1011, %v1007
        %v1076 = vpack.c.b16 %v1012, %v1008
        %v1077 = vpack.c.b16 %v1013, %v1009
        %v1078 = vpack.c.b16 %v1014, %v1010
        %1143 = vmatpush.bf16.msra.mxu0 %v1043
        %1144 = vmatpush.bf16.msra.mxu0 %v1039
        %1145 = vmatpush.bf16.msra.mxu0 %v1035
        %1146 = vmatpush.bf16.msra.mxu0 %v1031
        %1147 = vmatpush.bf16.msra.mxu0 %v1027
        %1148 = vmatpush.bf16.msra.mxu0 %v1023
        %1149 = vmatpush.bf16.msra.mxu0 %v1019
        %1150 = vmatpush.bf16.msra.mxu0 %v1015
        %1151 = vmatmul.bf16.gmra.mxu0 %v759
        %v1152 = vpop.f32.mrf.mxu0
        %v1153 = vadd.f32 0.0, %v1152
        %v1154 = vpop.f32.mrf.mxu0
        %v1155 = vadd.f32 0.0, %v1154
        %1156 = vmatmul.bf16.gmra.mxu0 %v761
        %v1157 = vpop.f32.mrf.mxu0
        %v1158 = vadd.f32 0.0, %v1157
        %v1159 = vpop.f32.mrf.mxu0
        %v1160 = vadd.f32 0.0, %v1159
        %1161 = vmatmul.bf16.gmra.mxu0 %v763
        %v1162 = vpop.f32.mrf.mxu0
        %v1163 = vadd.f32 0.0, %v1162
        %v1164 = vpop.f32.mrf.mxu0
        %v1165 = vadd.f32 0.0, %v1164
        %1166 = vmatmul.bf16.gmra.mxu0 %v765
        %v1167 = vpop.f32.mrf.mxu0
        %v1168 = vadd.f32 0.0, %v1167
        %v1169 = vpop.f32.mrf.mxu0
        %v1170 = vadd.f32 0.0, %v1169
        %1171 = vmatmul.bf16.gmra.mxu0 %v767
        %v1172 = vpop.f32.mrf.mxu0
        %v1173 = vadd.f32 0.0, %v1172
        %v1174 = vpop.f32.mrf.mxu0
        %v1175 = vadd.f32 0.0, %v1174
        %1176 = vmatmul.bf16.gmra.mxu0 %v769
        %v1177 = vpop.f32.mrf.mxu0
        %v1178 = vadd.f32 0.0, %v1177
        %v1179 = vpop.f32.mrf.mxu0
        %v1180 = vadd.f32 0.0, %v1179
        %1181 = vmatmul.bf16.gmra.mxu0 %v771
        %v1182 = vpop.f32.mrf.mxu0
        %v1183 = vadd.f32 0.0, %v1182
        %v1184 = vpop.f32.mrf.mxu0
        %v1185 = vadd.f32 0.0, %v1184
        %1186 = vmatmul.bf16.gmra.mxu0 %v773
        %v1187 = vpop.f32.mrf.mxu0
        %v1188 = vadd.f32 0.0, %v1187
        %v1189 = vpop.f32.mrf.mxu0
        %v1190 = vadd.f32 0.0, %v1189
        %1191 = vmatmul.bf16.gmra.mxu0 %v775
        %v1192 = vpop.f32.mrf.mxu0
        %v1193 = vadd.f32 0.0, %v1192
        %v1194 = vpop.f32.mrf.mxu0
        %v1195 = vadd.f32 0.0, %v1194
        %1196 = vmatmul.bf16.gmra.mxu0 %v777
        %v1197 = vpop.f32.mrf.mxu0
        %v1198 = vadd.f32 0.0, %v1197
        %v1199 = vpop.f32.mrf.mxu0
        %v1200 = vadd.f32 0.0, %v1199
        %1201 = vmatmul.bf16.gmra.mxu0 %v779
        %v1202 = vpop.f32.mrf.mxu0
        %v1203 = vadd.f32 0.0, %v1202
        %v1204 = vpop.f32.mrf.mxu0
        %v1205 = vadd.f32 0.0, %v1204
        %1206 = vmatmul.bf16.gmra.mxu0 %v781
        %v1207 = vpop.f32.mrf.mxu0
        %v1208 = vadd.f32 0.0, %v1207
        %v1209 = vpop.f32.mrf.mxu0
        %v1210 = vadd.f32 0.0, %v1209
        %1211 = vmatmul.bf16.gmra.mxu0 %v783
        %v1212 = vpop.f32.mrf.mxu0
        %v1213 = vadd.f32 0.0, %v1212
        %v1214 = vpop.f32.mrf.mxu0
        %v1215 = vadd.f32 0.0, %v1214
        %1216 = vmatmul.bf16.gmra.mxu0 %v785
        %v1217 = vpop.f32.mrf.mxu0
        %v1218 = vadd.f32 0.0, %v1217
        %v1219 = vpop.f32.mrf.mxu0
        %v1220 = vadd.f32 0.0, %v1219
        %1221 = vmatmul.bf16.gmra.mxu0 %v787
        %v1222 = vpop.f32.mrf.mxu0
        %v1223 = vadd.f32 0.0, %v1222
        %v1224 = vpop.f32.mrf.mxu0
        %v1225 = vadd.f32 0.0, %v1224
        %1226 = vmatmul.bf16.gmra.mxu0 %v789
        %v1227 = vpop.f32.mrf.mxu0
        %v1228 = vadd.f32 0.0, %v1227
        %v1229 = vpop.f32.mrf.mxu0
        %v1230 = vadd.f32 0.0, %v1229
        %1231 = vdwg.mxu0
        %1232 = vmatpush.bf16.msra.mxu0 %v1075
        %1233 = vmatpush.bf16.msra.mxu0 %v1071
        %1234 = vmatpush.bf16.msra.mxu0 %v1067
        %1235 = vmatpush.bf16.msra.mxu0 %v1063
        %1236 = vmatpush.bf16.msra.mxu0 %v1059
        %1237 = vmatpush.bf16.msra.mxu0 %v1055
        %1238 = vmatpush.bf16.msra.mxu0 %v1051
        %1239 = vmatpush.bf16.msra.mxu0 %v1047
        %1240 = vmatmul.bf16.gmra.mxu0 %v760
        %v1241 = vpop.f32.mrf.mxu0
        %v1242 = vadd.f32 %v1153, %v1241
        %v1243 = vpop.f32.mrf.mxu0
        %v1244 = vadd.f32 %v1155, %v1243
        %1245 = vmatmul.bf16.gmra.mxu0 %v762
        %v1246 = vpop.f32.mrf.mxu0
        %v1247 = vadd.f32 %v1158, %v1246
        %v1248 = vpop.f32.mrf.mxu0
        %v1249 = vadd.f32 %v1160, %v1248
        %1250 = vmatmul.bf16.gmra.mxu0 %v764
        %v1251 = vpop.f32.mrf.mxu0
        %v1252 = vadd.f32 %v1163, %v1251
        %v1253 = vpop.f32.mrf.mxu0
        %v1254 = vadd.f32 %v1165, %v1253
        %1255 = vmatmul.bf16.gmra.mxu0 %v766
        %v1256 = vpop.f32.mrf.mxu0
        %v1257 = vadd.f32 %v1168, %v1256
        %v1258 = vpop.f32.mrf.mxu0
        %v1259 = vadd.f32 %v1170, %v1258
        %1260 = vmatmul.bf16.gmra.mxu0 %v768
        %v1261 = vpop.f32.mrf.mxu0
        %v1262 = vadd.f32 %v1173, %v1261
        %v1263 = vpop.f32.mrf.mxu0
        %v1264 = vadd.f32 %v1175, %v1263
        %1265 = vmatmul.bf16.gmra.mxu0 %v770
        %v1266 = vpop.f32.mrf.mxu0
        %v1267 = vadd.f32 %v1178, %v1266
        %v1268 = vpop.f32.mrf.mxu0
        %v1269 = vadd.f32 %v1180, %v1268
        %1270 = vmatmul.bf16.gmra.mxu0 %v772
        %v1271 = vpop.f32.mrf.mxu0
        %v1272 = vadd.f32 %v1183, %v1271
        %v1273 = vpop.f32.mrf.mxu0
        %v1274 = vadd.f32 %v1185, %v1273
        %1275 = vmatmul.bf16.gmra.mxu0 %v774
        %v1276 = vpop.f32.mrf.mxu0
        %v1277 = vadd.f32 %v1188, %v1276
        %v1278 = vpop.f32.mrf.mxu0
        %v1279 = vadd.f32 %v1190, %v1278
        %1280 = vmatmul.bf16.gmra.mxu0 %v776
        %v1281 = vpop.f32.mrf.mxu0
        %v1282 = vadd.f32 %v1193, %v1281
        %v1283 = vpop.f32.mrf.mxu0
        %v1284 = vadd.f32 %v1195, %v1283
        %1285 = vmatmul.bf16.gmra.mxu0 %v778
        %v1286 = vpop.f32.mrf.mxu0
        %v1287 = vadd.f32 %v1198, %v1286
        %v1288 = vpop.f32.mrf.mxu0
        %v1289 = vadd.f32 %v1200, %v1288
        %1290 = vmatmul.bf16.gmra.mxu0 %v780
        %v1291 = vpop.f32.mrf.mxu0
        %v1292 = vadd.f32 %v1203, %v1291
        %v1293 = vpop.f32.mrf.mxu0
        %v1294 = vadd.f32 %v1205, %v1293
        %1295 = vmatmul.bf16.gmra.mxu0 %v782
        %v1296 = vpop.f32.mrf.mxu0
        %v1297 = vadd.f32 %v1208, %v1296
        %v1298 = vpop.f32.mrf.mxu0
        %v1299 = vadd.f32 %v1210, %v1298
        %1300 = vmatmul.bf16.gmra.mxu0 %v784
        %v1301 = vpop.f32.mrf.mxu0
        %v1302 = vadd.f32 %v1213, %v1301
        %v1303 = vpop.f32.mrf.mxu0
        %v1304 = vadd.f32 %v1215, %v1303
        %1305 = vmatmul.bf16.gmra.mxu0 %v786
        %v1306 = vpop.f32.mrf.mxu0
        %v1307 = vadd.f32 %v1218, %v1306
        %v1308 = vpop.f32.mrf.mxu0
        %v1309 = vadd.f32 %v1220, %v1308
        %1310 = vmatmul.bf16.gmra.mxu0 %v788
        %v1311 = vpop.f32.mrf.mxu0
        %v1312 = vadd.f32 %v1223, %v1311
        %v1313 = vpop.f32.mrf.mxu0
        %v1314 = vadd.f32 %v1225, %v1313
        %1315 = vmatmul.bf16.gmra.mxu0 %v790
        %v1316 = vpop.f32.mrf.mxu0
        %v1317 = vadd.f32 %v1228, %v1316
        %v1318 = vpop.f32.mrf.mxu0
        %v1319 = vadd.f32 %v1230, %v1318
        %1320 = vdwg.mxu0
        %1321 = vmatpush.bf16.msra.mxu0 %v1044
        %1322 = vmatpush.bf16.msra.mxu0 %v1040
        %1323 = vmatpush.bf16.msra.mxu0 %v1036
        %1324 = vmatpush.bf16.msra.mxu0 %v1032
        %1325 = vmatpush.bf16.msra.mxu0 %v1028
        %1326 = vmatpush.bf16.msra.mxu0 %v1024
        %1327 = vmatpush.bf16.msra.mxu0 %v1020
        %1328 = vmatpush.bf16.msra.mxu0 %v1016
        %1329 = vmatmul.bf16.gmra.mxu0 %v759
        %v1330 = vpop.f32.mrf.mxu0
        %v1331 = vadd.f32 0.0, %v1330
        %v1332 = vpop.f32.mrf.mxu0
        %v1333 = vadd.f32 0.0, %v1332
        %1334 = vmatmul.bf16.gmra.mxu0 %v761
        %v1335 = vpop.f32.mrf.mxu0
        %v1336 = vadd.f32 0.0, %v1335
        %v1337 = vpop.f32.mrf.mxu0
        %v1338 = vadd.f32 0.0, %v1337
        %1339 = vmatmul.bf16.gmra.mxu0 %v763
        %v1340 = vpop.f32.mrf.mxu0
        %v1341 = vadd.f32 0.0, %v1340
        %v1342 = vpop.f32.mrf.mxu0
        %v1343 = vadd.f32 0.0, %v1342
        %1344 = vmatmul.bf16.gmra.mxu0 %v765
        %v1345 = vpop.f32.mrf.mxu0
        %v1346 = vadd.f32 0.0, %v1345
        %v1347 = vpop.f32.mrf.mxu0
        %v1348 = vadd.f32 0.0, %v1347
        %1349 = vmatmul.bf16.gmra.mxu0 %v767
        %v1350 = vpop.f32.mrf.mxu0
        %v1351 = vadd.f32 0.0, %v1350
        %v1352 = vpop.f32.mrf.mxu0
        %v1353 = vadd.f32 0.0, %v1352
        %1354 = vmatmul.bf16.gmra.mxu0 %v769
        %v1355 = vpop.f32.mrf.mxu0
        %v1356 = vadd.f32 0.0, %v1355
        %v1357 = vpop.f32.mrf.mxu0
        %v1358 = vadd.f32 0.0, %v1357
        %1359 = vmatmul.bf16.gmra.mxu0 %v771
        %v1360 = vpop.f32.mrf.mxu0
        %v1361 = vadd.f32 0.0, %v1360
        %v1362 = vpop.f32.mrf.mxu0
        %v1363 = vadd.f32 0.0, %v1362
        %1364 = vmatmul.bf16.gmra.mxu0 %v773
        %v1365 = vpop.f32.mrf.mxu0
        %v1366 = vadd.f32 0.0, %v1365
        %v1367 = vpop.f32.mrf.mxu0
        %v1368 = vadd.f32 0.0, %v1367
        %1369 = vmatmul.bf16.gmra.mxu0 %v775
        %v1370 = vpop.f32.mrf.mxu0
        %v1371 = vadd.f32 0.0, %v1370
        %v1372 = vpop.f32.mrf.mxu0
        %v1373 = vadd.f32 0.0, %v1372
        %1374 = vmatmul.bf16.gmra.mxu0 %v777
        %v1375 = vpop.f32.mrf.mxu0
        %v1376 = vadd.f32 0.0, %v1375
        %v1377 = vpop.f32.mrf.mxu0
        %v1378 = vadd.f32 0.0, %v1377
        %1379 = vmatmul.bf16.gmra.mxu0 %v779
        %v1380 = vpop.f32.mrf.mxu0
        %v1381 = vadd.f32 0.0, %v1380
        %v1382 = vpop.f32.mrf.mxu0
        %v1383 = vadd.f32 0.0, %v1382
        %1384 = vmatmul.bf16.gmra.mxu0 %v781
        %v1385 = vpop.f32.mrf.mxu0
        %v1386 = vadd.f32 0.0, %v1385
        %v1387 = vpop.f32.mrf.mxu0
        %v1388 = vadd.f32 0.0, %v1387
        %1389 = vmatmul.bf16.gmra.mxu0 %v783
        %v1390 = vpop.f32.mrf.mxu0
        %v1391 = vadd.f32 0.0, %v1390
        %v1392 = vpop.f32.mrf.mxu0
        %v1393 = vadd.f32 0.0, %v1392
        %1394 = vmatmul.bf16.gmra.mxu0 %v785
        %v1395 = vpop.f32.mrf.mxu0
        %v1396 = vadd.f32 0.0, %v1395
        %v1397 = vpop.f32.mrf.mxu0
        %v1398 = vadd.f32 0.0, %v1397
        %1399 = vmatmul.bf16.gmra.mxu0 %v787
        %v1400 = vpop.f32.mrf.mxu0
        %v1401 = vadd.f32 0.0, %v1400
        %v1402 = vpop.f32.mrf.mxu0
        %v1403 = vadd.f32 0.0, %v1402
        %1404 = vmatmul.bf16.gmra.mxu0 %v789
        %v1405 = vpop.f32.mrf.mxu0
        %v1406 = vadd.f32 0.0, %v1405
        %v1407 = vpop.f32.mrf.mxu0
        %v1408 = vadd.f32 0.0, %v1407
        %1409 = vdwg.mxu0
        %1410 = vmatpush.bf16.msra.mxu0 %v1076
        %1411 = vmatpush.bf16.msra.mxu0 %v1072
        %1412 = vmatpush.bf16.msra.mxu0 %v1068
        %1413 = vmatpush.bf16.msra.mxu0 %v1064
        %1414 = vmatpush.bf16.msra.mxu0 %v1060
        %1415 = vmatpush.bf16.msra.mxu0 %v1056
        %1416 = vmatpush.bf16.msra.mxu0 %v1052
        %1417 = vmatpush.bf16.msra.mxu0 %v1048
        %1418 = vmatmul.bf16.gmra.mxu0 %v760
        %v1419 = vpop.f32.mrf.mxu0
        %v1420 = vadd.f32 %v1331, %v1419
        %v1421 = vpop.f32.mrf.mxu0
        %v1422 = vadd.f32 %v1333, %v1421
        %1423 = vmatmul.bf16.gmra.mxu0 %v762
        %v1424 = vpop.f32.mrf.mxu0
        %v1425 = vadd.f32 %v1336, %v1424
        %v1426 = vpop.f32.mrf.mxu0
        %v1427 = vadd.f32 %v1338, %v1426
        %1428 = vmatmul.bf16.gmra.mxu0 %v764
        %v1429 = vpop.f32.mrf.mxu0
        %v1430 = vadd.f32 %v1341, %v1429
        %v1431 = vpop.f32.mrf.mxu0
        %v1432 = vadd.f32 %v1343, %v1431
        %1433 = vmatmul.bf16.gmra.mxu0 %v766
        %v1434 = vpop.f32.mrf.mxu0
        %v1435 = vadd.f32 %v1346, %v1434
        %v1436 = vpop.f32.mrf.mxu0
        %v1437 = vadd.f32 %v1348, %v1436
        %1438 = vmatmul.bf16.gmra.mxu0 %v768
        %v1439 = vpop.f32.mrf.mxu0
        %v1440 = vadd.f32 %v1351, %v1439
        %v1441 = vpop.f32.mrf.mxu0
        %v1442 = vadd.f32 %v1353, %v1441
        %1443 = vmatmul.bf16.gmra.mxu0 %v770
        %v1444 = vpop.f32.mrf.mxu0
        %v1445 = vadd.f32 %v1356, %v1444
        %v1446 = vpop.f32.mrf.mxu0
        %v1447 = vadd.f32 %v1358, %v1446
        %1448 = vmatmul.bf16.gmra.mxu0 %v772
        %v1449 = vpop.f32.mrf.mxu0
        %v1450 = vadd.f32 %v1361, %v1449
        %v1451 = vpop.f32.mrf.mxu0
        %v1452 = vadd.f32 %v1363, %v1451
        %1453 = vmatmul.bf16.gmra.mxu0 %v774
        %v1454 = vpop.f32.mrf.mxu0
        %v1455 = vadd.f32 %v1366, %v1454
        %v1456 = vpop.f32.mrf.mxu0
        %v1457 = vadd.f32 %v1368, %v1456
        %1458 = vmatmul.bf16.gmra.mxu0 %v776
        %v1459 = vpop.f32.mrf.mxu0
        %v1460 = vadd.f32 %v1371, %v1459
        %v1461 = vpop.f32.mrf.mxu0
        %v1462 = vadd.f32 %v1373, %v1461
        %1463 = vmatmul.bf16.gmra.mxu0 %v778
        %v1464 = vpop.f32.mrf.mxu0
        %v1465 = vadd.f32 %v1376, %v1464
        %v1466 = vpop.f32.mrf.mxu0
        %v1467 = vadd.f32 %v1378, %v1466
        %1468 = vmatmul.bf16.gmra.mxu0 %v780
        %v1469 = vpop.f32.mrf.mxu0
        %v1470 = vadd.f32 %v1381, %v1469
        %v1471 = vpop.f32.mrf.mxu0
        %v1472 = vadd.f32 %v1383, %v1471
        %1473 = vmatmul.bf16.gmra.mxu0 %v782
        %v1474 = vpop.f32.mrf.mxu0
        %v1475 = vadd.f32 %v1386, %v1474
        %v1476 = vpop.f32.mrf.mxu0
        %v1477 = vadd.f32 %v1388, %v1476
        %1478 = vmatmul.bf16.gmra.mxu0 %v784
        %v1479 = vpop.f32.mrf.mxu0
        %v1480 = vadd.f32 %v1391, %v1479
        %v1481 = vpop.f32.mrf.mxu0
        %v1482 = vadd.f32 %v1393, %v1481
        %1483 = vmatmul.bf16.gmra.mxu0 %v786
        %v1484 = vpop.f32.mrf.mxu0
        %v1485 = vadd.f32 %v1396, %v1484
        %v1486 = vpop.f32.mrf.mxu0
        %v1487 = vadd.f32 %v1398, %v1486
        %1488 = vmatmul.bf16.gmra.mxu0 %v788
        %v1489 = vpop.f32.mrf.mxu0
        %v1490 = vadd.f32 %v1401, %v1489
        %v1491 = vpop.f32.mrf.mxu0
        %v1492 = vadd.f32 %v1403, %v1491
        %1493 = vmatmul.bf16.gmra.mxu0 %v790
        %v1494 = vpop.f32.mrf.mxu0
        %v1495 = vadd.f32 %v1406, %v1494
        %v1496 = vpop.f32.mrf.mxu0
        %v1497 = vadd.f32 %v1408, %v1496
        %1498 = vdwg.mxu0
        %1499 = vmatpush.bf16.msra.mxu0 %v1045
        %1500 = vmatpush.bf16.msra.mxu0 %v1041
        %1501 = vmatpush.bf16.msra.mxu0 %v1037
        %1502 = vmatpush.bf16.msra.mxu0 %v1033
        %1503 = vmatpush.bf16.msra.mxu0 %v1029
        %1504 = vmatpush.bf16.msra.mxu0 %v1025
        %1505 = vmatpush.bf16.msra.mxu0 %v1021
        %1506 = vmatpush.bf16.msra.mxu0 %v1017
        %1507 = vmatmul.bf16.gmra.mxu0 %v759
        %v1508 = vpop.f32.mrf.mxu0
        %v1509 = vadd.f32 0.0, %v1508
        %v1510 = vpop.f32.mrf.mxu0
        %v1511 = vadd.f32 0.0, %v1510
        %1512 = vmatmul.bf16.gmra.mxu0 %v761
        %v1513 = vpop.f32.mrf.mxu0
        %v1514 = vadd.f32 0.0, %v1513
        %v1515 = vpop.f32.mrf.mxu0
        %v1516 = vadd.f32 0.0, %v1515
        %1517 = vmatmul.bf16.gmra.mxu0 %v763
        %v1518 = vpop.f32.mrf.mxu0
        %v1519 = vadd.f32 0.0, %v1518
        %v1520 = vpop.f32.mrf.mxu0
        %v1521 = vadd.f32 0.0, %v1520
        %1522 = vmatmul.bf16.gmra.mxu0 %v765
        %v1523 = vpop.f32.mrf.mxu0
        %v1524 = vadd.f32 0.0, %v1523
        %v1525 = vpop.f32.mrf.mxu0
        %v1526 = vadd.f32 0.0, %v1525
        %1527 = vmatmul.bf16.gmra.mxu0 %v767
        %v1528 = vpop.f32.mrf.mxu0
        %v1529 = vadd.f32 0.0, %v1528
        %v1530 = vpop.f32.mrf.mxu0
        %v1531 = vadd.f32 0.0, %v1530
        %1532 = vmatmul.bf16.gmra.mxu0 %v769
        %v1533 = vpop.f32.mrf.mxu0
        %v1534 = vadd.f32 0.0, %v1533
        %v1535 = vpop.f32.mrf.mxu0
        %v1536 = vadd.f32 0.0, %v1535
        %1537 = vmatmul.bf16.gmra.mxu0 %v771
        %v1538 = vpop.f32.mrf.mxu0
        %v1539 = vadd.f32 0.0, %v1538
        %v1540 = vpop.f32.mrf.mxu0
        %v1541 = vadd.f32 0.0, %v1540
        %1542 = vmatmul.bf16.gmra.mxu0 %v773
        %v1543 = vpop.f32.mrf.mxu0
        %v1544 = vadd.f32 0.0, %v1543
        %v1545 = vpop.f32.mrf.mxu0
        %v1546 = vadd.f32 0.0, %v1545
        %1547 = vmatmul.bf16.gmra.mxu0 %v775
        %v1548 = vpop.f32.mrf.mxu0
        %v1549 = vadd.f32 0.0, %v1548
        %v1550 = vpop.f32.mrf.mxu0
        %v1551 = vadd.f32 0.0, %v1550
        %1552 = vmatmul.bf16.gmra.mxu0 %v777
        %v1553 = vpop.f32.mrf.mxu0
        %v1554 = vadd.f32 0.0, %v1553
        %v1555 = vpop.f32.mrf.mxu0
        %v1556 = vadd.f32 0.0, %v1555
        %1557 = vmatmul.bf16.gmra.mxu0 %v779
        %v1558 = vpop.f32.mrf.mxu0
        %v1559 = vadd.f32 0.0, %v1558
        %v1560 = vpop.f32.mrf.mxu0
        %v1561 = vadd.f32 0.0, %v1560
        %1562 = vmatmul.bf16.gmra.mxu0 %v781
        %v1563 = vpop.f32.mrf.mxu0
        %v1564 = vadd.f32 0.0, %v1563
        %v1565 = vpop.f32.mrf.mxu0
        %v1566 = vadd.f32 0.0, %v1565
        %1567 = vmatmul.bf16.gmra.mxu0 %v783
        %v1568 = vpop.f32.mrf.mxu0
        %v1569 = vadd.f32 0.0, %v1568
        %v1570 = vpop.f32.mrf.mxu0
        %v1571 = vadd.f32 0.0, %v1570
        %1572 = vmatmul.bf16.gmra.mxu0 %v785
        %v1573 = vpop.f32.mrf.mxu0
        %v1574 = vadd.f32 0.0, %v1573
        %v1575 = vpop.f32.mrf.mxu0
        %v1576 = vadd.f32 0.0, %v1575
        %1577 = vmatmul.bf16.gmra.mxu0 %v787
        %v1578 = vpop.f32.mrf.mxu0
        %v1579 = vadd.f32 0.0, %v1578
        %v1580 = vpop.f32.mrf.mxu0
        %v1581 = vadd.f32 0.0, %v1580
        %1582 = vmatmul.bf16.gmra.mxu0 %v789
        %v1583 = vpop.f32.mrf.mxu0
        %v1584 = vadd.f32 0.0, %v1583
        %v1585 = vpop.f32.mrf.mxu0
        %v1586 = vadd.f32 0.0, %v1585
        %1587 = vdwg.mxu0
        %1588 = vmatpush.bf16.msra.mxu0 %v1077
        %1589 = vmatpush.bf16.msra.mxu0 %v1073
        %1590 = vmatpush.bf16.msra.mxu0 %v1069
        %1591 = vmatpush.bf16.msra.mxu0 %v1065
        %1592 = vmatpush.bf16.msra.mxu0 %v1061
        %1593 = vmatpush.bf16.msra.mxu0 %v1057
        %1594 = vmatpush.bf16.msra.mxu0 %v1053
        %1595 = vmatpush.bf16.msra.mxu0 %v1049
        %1596 = vmatmul.bf16.gmra.mxu0 %v760
        %v1597 = vpop.f32.mrf.mxu0
        %v1598 = vadd.f32 %v1509, %v1597
        %v1599 = vpop.f32.mrf.mxu0
        %v1600 = vadd.f32 %v1511, %v1599
        %1601 = vmatmul.bf16.gmra.mxu0 %v762
        %v1602 = vpop.f32.mrf.mxu0
        %v1603 = vadd.f32 %v1514, %v1602
        %v1604 = vpop.f32.mrf.mxu0
        %v1605 = vadd.f32 %v1516, %v1604
        %1606 = vmatmul.bf16.gmra.mxu0 %v764
        %v1607 = vpop.f32.mrf.mxu0
        %v1608 = vadd.f32 %v1519, %v1607
        %v1609 = vpop.f32.mrf.mxu0
        %v1610 = vadd.f32 %v1521, %v1609
        %1611 = vmatmul.bf16.gmra.mxu0 %v766
        %v1612 = vpop.f32.mrf.mxu0
        %v1613 = vadd.f32 %v1524, %v1612
        %v1614 = vpop.f32.mrf.mxu0
        %v1615 = vadd.f32 %v1526, %v1614
        %1616 = vmatmul.bf16.gmra.mxu0 %v768
        %v1617 = vpop.f32.mrf.mxu0
        %v1618 = vadd.f32 %v1529, %v1617
        %v1619 = vpop.f32.mrf.mxu0
        %v1620 = vadd.f32 %v1531, %v1619
        %1621 = vmatmul.bf16.gmra.mxu0 %v770
        %v1622 = vpop.f32.mrf.mxu0
        %v1623 = vadd.f32 %v1534, %v1622
        %v1624 = vpop.f32.mrf.mxu0
        %v1625 = vadd.f32 %v1536, %v1624
        %1626 = vmatmul.bf16.gmra.mxu0 %v772
        %v1627 = vpop.f32.mrf.mxu0
        %v1628 = vadd.f32 %v1539, %v1627
        %v1629 = vpop.f32.mrf.mxu0
        %v1630 = vadd.f32 %v1541, %v1629
        %1631 = vmatmul.bf16.gmra.mxu0 %v774
        %v1632 = vpop.f32.mrf.mxu0
        %v1633 = vadd.f32 %v1544, %v1632
        %v1634 = vpop.f32.mrf.mxu0
        %v1635 = vadd.f32 %v1546, %v1634
        %1636 = vmatmul.bf16.gmra.mxu0 %v776
        %v1637 = vpop.f32.mrf.mxu0
        %v1638 = vadd.f32 %v1549, %v1637
        %v1639 = vpop.f32.mrf.mxu0
        %v1640 = vadd.f32 %v1551, %v1639
        %1641 = vmatmul.bf16.gmra.mxu0 %v778
        %v1642 = vpop.f32.mrf.mxu0
        %v1643 = vadd.f32 %v1554, %v1642
        %v1644 = vpop.f32.mrf.mxu0
        %v1645 = vadd.f32 %v1556, %v1644
        %1646 = vmatmul.bf16.gmra.mxu0 %v780
        %v1647 = vpop.f32.mrf.mxu0
        %v1648 = vadd.f32 %v1559, %v1647
        %v1649 = vpop.f32.mrf.mxu0
        %v1650 = vadd.f32 %v1561, %v1649
        %1651 = vmatmul.bf16.gmra.mxu0 %v782
        %v1652 = vpop.f32.mrf.mxu0
        %v1653 = vadd.f32 %v1564, %v1652
        %v1654 = vpop.f32.mrf.mxu0
        %v1655 = vadd.f32 %v1566, %v1654
        %1656 = vmatmul.bf16.gmra.mxu0 %v784
        %v1657 = vpop.f32.mrf.mxu0
        %v1658 = vadd.f32 %v1569, %v1657
        %v1659 = vpop.f32.mrf.mxu0
        %v1660 = vadd.f32 %v1571, %v1659
        %1661 = vmatmul.bf16.gmra.mxu0 %v786
        %v1662 = vpop.f32.mrf.mxu0
        %v1663 = vadd.f32 %v1574, %v1662
        %v1664 = vpop.f32.mrf.mxu0
        %v1665 = vadd.f32 %v1576, %v1664
        %1666 = vmatmul.bf16.gmra.mxu0 %v788
        %v1667 = vpop.f32.mrf.mxu0
        %v1668 = vadd.f32 %v1579, %v1667
        %v1669 = vpop.f32.mrf.mxu0
        %v1670 = vadd.f32 %v1581, %v1669
        %1671 = vmatmul.bf16.gmra.mxu0 %v790
        %v1672 = vpop.f32.mrf.mxu0
        %v1673 = vadd.f32 %v1584, %v1672
        %v1674 = vpop.f32.mrf.mxu0
        %v1675 = vadd.f32 %v1586, %v1674
        %1676 = vdwg.mxu0
        %1677 = vmatpush.bf16.msra.mxu0 %v1046
        %1678 = vmatpush.bf16.msra.mxu0 %v1042
        %1679 = vmatpush.bf16.msra.mxu0 %v1038
        %1680 = vmatpush.bf16.msra.mxu0 %v1034
        %1681 = vmatpush.bf16.msra.mxu0 %v1030
        %1682 = vmatpush.bf16.msra.mxu0 %v1026
        %1683 = vmatpush.bf16.msra.mxu0 %v1022
        %1684 = vmatpush.bf16.msra.mxu0 %v1018
        %1685 = vmatmul.bf16.gmra.mxu0 %v759
        %v1686 = vpop.f32.mrf.mxu0
        %v1687 = vadd.f32 0.0, %v1686
        %v1688 = vpop.f32.mrf.mxu0
        %v1689 = vadd.f32 0.0, %v1688
        %1690 = vmatmul.bf16.gmra.mxu0 %v761
        %v1691 = vpop.f32.mrf.mxu0
        %v1692 = vadd.f32 0.0, %v1691
        %v1693 = vpop.f32.mrf.mxu0
        %v1694 = vadd.f32 0.0, %v1693
        %1695 = vmatmul.bf16.gmra.mxu0 %v763
        %v1696 = vpop.f32.mrf.mxu0
        %v1697 = vadd.f32 0.0, %v1696
        %v1698 = vpop.f32.mrf.mxu0
        %v1699 = vadd.f32 0.0, %v1698
        %1700 = vmatmul.bf16.gmra.mxu0 %v765
        %v1701 = vpop.f32.mrf.mxu0
        %v1702 = vadd.f32 0.0, %v1701
        %v1703 = vpop.f32.mrf.mxu0
        %v1704 = vadd.f32 0.0, %v1703
        %1705 = vmatmul.bf16.gmra.mxu0 %v767
        %v1706 = vpop.f32.mrf.mxu0
        %v1707 = vadd.f32 0.0, %v1706
        %v1708 = vpop.f32.mrf.mxu0
        %v1709 = vadd.f32 0.0, %v1708
        %1710 = vmatmul.bf16.gmra.mxu0 %v769
        %v1711 = vpop.f32.mrf.mxu0
        %v1712 = vadd.f32 0.0, %v1711
        %v1713 = vpop.f32.mrf.mxu0
        %v1714 = vadd.f32 0.0, %v1713
        %1715 = vmatmul.bf16.gmra.mxu0 %v771
        %v1716 = vpop.f32.mrf.mxu0
        %v1717 = vadd.f32 0.0, %v1716
        %v1718 = vpop.f32.mrf.mxu0
        %v1719 = vadd.f32 0.0, %v1718
        %1720 = vmatmul.bf16.gmra.mxu0 %v773
        %v1721 = vpop.f32.mrf.mxu0
        %v1722 = vadd.f32 0.0, %v1721
        %v1723 = vpop.f32.mrf.mxu0
        %v1724 = vadd.f32 0.0, %v1723
        %1725 = vmatmul.bf16.gmra.mxu0 %v775
        %v1726 = vpop.f32.mrf.mxu0
        %v1727 = vadd.f32 0.0, %v1726
        %v1728 = vpop.f32.mrf.mxu0
        %v1729 = vadd.f32 0.0, %v1728
        %1730 = vmatmul.bf16.gmra.mxu0 %v777
        %v1731 = vpop.f32.mrf.mxu0
        %v1732 = vadd.f32 0.0, %v1731
        %v1733 = vpop.f32.mrf.mxu0
        %v1734 = vadd.f32 0.0, %v1733
        %1735 = vmatmul.bf16.gmra.mxu0 %v779
        %v1736 = vpop.f32.mrf.mxu0
        %v1737 = vadd.f32 0.0, %v1736
        %v1738 = vpop.f32.mrf.mxu0
        %v1739 = vadd.f32 0.0, %v1738
        %1740 = vmatmul.bf16.gmra.mxu0 %v781
        %v1741 = vpop.f32.mrf.mxu0
        %v1742 = vadd.f32 0.0, %v1741
        %v1743 = vpop.f32.mrf.mxu0
        %v1744 = vadd.f32 0.0, %v1743
        %1745 = vmatmul.bf16.gmra.mxu0 %v783
        %v1746 = vpop.f32.mrf.mxu0
        %v1747 = vadd.f32 0.0, %v1746
        %v1748 = vpop.f32.mrf.mxu0
        %v1749 = vadd.f32 0.0, %v1748
        %1750 = vmatmul.bf16.gmra.mxu0 %v785
        %v1751 = vpop.f32.mrf.mxu0
        %v1752 = vadd.f32 0.0, %v1751
        %v1753 = vpop.f32.mrf.mxu0
        %v1754 = vadd.f32 0.0, %v1753
        %1755 = vmatmul.bf16.gmra.mxu0 %v787
        %v1756 = vpop.f32.mrf.mxu0
        %v1757 = vadd.f32 0.0, %v1756
        %v1758 = vpop.f32.mrf.mxu0
        %v1759 = vadd.f32 0.0, %v1758
        %1760 = vmatmul.bf16.gmra.mxu0 %v789
        %v1761 = vpop.f32.mrf.mxu0
        %v1762 = vadd.f32 0.0, %v1761
        %v1763 = vpop.f32.mrf.mxu0
        %v1764 = vadd.f32 0.0, %v1763
        %1765 = vdwg.mxu0
        %1766 = vmatpush.bf16.msra.mxu0 %v1078
        %1767 = vmatpush.bf16.msra.mxu0 %v1074
        %1768 = vmatpush.bf16.msra.mxu0 %v1070
        %1769 = vmatpush.bf16.msra.mxu0 %v1066
        %1770 = vmatpush.bf16.msra.mxu0 %v1062
        %1771 = vmatpush.bf16.msra.mxu0 %v1058
        %1772 = vmatpush.bf16.msra.mxu0 %v1054
        %1773 = vmatpush.bf16.msra.mxu0 %v1050
        %1774 = vmatmul.bf16.gmra.mxu0 %v760
        %v1775 = vpop.f32.mrf.mxu0
        %v1776 = vadd.f32 %v1687, %v1775
        %v1777 = vpop.f32.mrf.mxu0
        %v1778 = vadd.f32 %v1689, %v1777
        %1779 = vmatmul.bf16.gmra.mxu0 %v762
        %v1780 = vpop.f32.mrf.mxu0
        %v1781 = vadd.f32 %v1692, %v1780
        %v1782 = vpop.f32.mrf.mxu0
        %v1783 = vadd.f32 %v1694, %v1782
        %1784 = vmatmul.bf16.gmra.mxu0 %v764
        %v1785 = vpop.f32.mrf.mxu0
        %v1786 = vadd.f32 %v1697, %v1785
        %v1787 = vpop.f32.mrf.mxu0
        %v1788 = vadd.f32 %v1699, %v1787
        %1789 = vmatmul.bf16.gmra.mxu0 %v766
        %v1790 = vpop.f32.mrf.mxu0
        %v1791 = vadd.f32 %v1702, %v1790
        %v1792 = vpop.f32.mrf.mxu0
        %v1793 = vadd.f32 %v1704, %v1792
        %1794 = vmatmul.bf16.gmra.mxu0 %v768
        %v1795 = vpop.f32.mrf.mxu0
        %v1796 = vadd.f32 %v1707, %v1795
        %v1797 = vpop.f32.mrf.mxu0
        %v1798 = vadd.f32 %v1709, %v1797
        %1799 = vmatmul.bf16.gmra.mxu0 %v770
        %v1800 = vpop.f32.mrf.mxu0
        %v1801 = vadd.f32 %v1712, %v1800
        %v1802 = vpop.f32.mrf.mxu0
        %v1803 = vadd.f32 %v1714, %v1802
        %1804 = vmatmul.bf16.gmra.mxu0 %v772
        %v1805 = vpop.f32.mrf.mxu0
        %v1806 = vadd.f32 %v1717, %v1805
        %v1807 = vpop.f32.mrf.mxu0
        %v1808 = vadd.f32 %v1719, %v1807
        %1809 = vmatmul.bf16.gmra.mxu0 %v774
        %v1810 = vpop.f32.mrf.mxu0
        %v1811 = vadd.f32 %v1722, %v1810
        %v1812 = vpop.f32.mrf.mxu0
        %v1813 = vadd.f32 %v1724, %v1812
        %1814 = vmatmul.bf16.gmra.mxu0 %v776
        %v1815 = vpop.f32.mrf.mxu0
        %v1816 = vadd.f32 %v1727, %v1815
        %v1817 = vpop.f32.mrf.mxu0
        %v1818 = vadd.f32 %v1729, %v1817
        %1819 = vmatmul.bf16.gmra.mxu0 %v778
        %v1820 = vpop.f32.mrf.mxu0
        %v1821 = vadd.f32 %v1732, %v1820
        %v1822 = vpop.f32.mrf.mxu0
        %v1823 = vadd.f32 %v1734, %v1822
        %1824 = vmatmul.bf16.gmra.mxu0 %v780
        %v1825 = vpop.f32.mrf.mxu0
        %v1826 = vadd.f32 %v1737, %v1825
        %v1827 = vpop.f32.mrf.mxu0
        %v1828 = vadd.f32 %v1739, %v1827
        %1829 = vmatmul.bf16.gmra.mxu0 %v782
        %v1830 = vpop.f32.mrf.mxu0
        %v1831 = vadd.f32 %v1742, %v1830
        %v1832 = vpop.f32.mrf.mxu0
        %v1833 = vadd.f32 %v1744, %v1832
        %1834 = vmatmul.bf16.gmra.mxu0 %v784
        %v1835 = vpop.f32.mrf.mxu0
        %v1836 = vadd.f32 %v1747, %v1835
        %v1837 = vpop.f32.mrf.mxu0
        %v1838 = vadd.f32 %v1749, %v1837
        %1839 = vmatmul.bf16.gmra.mxu0 %v786
        %v1840 = vpop.f32.mrf.mxu0
        %v1841 = vadd.f32 %v1752, %v1840
        %v1842 = vpop.f32.mrf.mxu0
        %v1843 = vadd.f32 %v1754, %v1842
        %1844 = vmatmul.bf16.gmra.mxu0 %v788
        %v1845 = vpop.f32.mrf.mxu0
        %v1846 = vadd.f32 %v1757, %v1845
        %v1847 = vpop.f32.mrf.mxu0
        %v1848 = vadd.f32 %v1759, %v1847
        %1849 = vmatmul.bf16.gmra.mxu0 %v790
        %v1850 = vpop.f32.mrf.mxu0
        %v1851 = vadd.f32 %v1762, %v1850
        %v1852 = vpop.f32.mrf.mxu0
        %v1853 = vadd.f32 %v1764, %v1852
        %1854 = vdwg.mxu0
        %v1855 = vadd.f32 %v439, %v1242
        %v1856 = vadd.f32 %v440, %v1420
        %v1857 = vadd.f32 %v441, %v1598
        %v1858 = vadd.f32 %v442, %v1776
        %v1859 = vadd.f32 %v443, %v1244
        %v1860 = vadd.f32 %v444, %v1422
        %v1861 = vadd.f32 %v445, %v1600
        %v1862 = vadd.f32 %v446, %v1778
        %v1863 = vadd.f32 %v447, %v1247
        %v1864 = vadd.f32 %v448, %v1425
        %v1865 = vadd.f32 %v449, %v1603
        %v1866 = vadd.f32 %v450, %v1781
        %v1867 = vadd.f32 %v451, %v1249
        %v1868 = vadd.f32 %v452, %v1427
        %v1869 = vadd.f32 %v453, %v1605
        %v1870 = vadd.f32 %v454, %v1783
        %v1871 = vadd.f32 %v455, %v1252
        %v1872 = vadd.f32 %v456, %v1430
        %v1873 = vadd.f32 %v457, %v1608
        %v1874 = vadd.f32 %v458, %v1786
        %v1875 = vadd.f32 %v459, %v1254
        %v1876 = vadd.f32 %v460, %v1432
        %v1877 = vadd.f32 %v461, %v1610
        %v1878 = vadd.f32 %v462, %v1788
        %v1879 = vadd.f32 %v463, %v1257
        %v1880 = vadd.f32 %v464, %v1435
        %v1881 = vadd.f32 %v465, %v1613
        %v1882 = vadd.f32 %v466, %v1791
        %v1883 = vadd.f32 %v467, %v1259
        %v1884 = vadd.f32 %v468, %v1437
        %v1885 = vadd.f32 %v469, %v1615
        %v1886 = vadd.f32 %v470, %v1793
        %v1887 = vadd.f32 %v471, %v1262
        %v1888 = vadd.f32 %v472, %v1440
        %v1889 = vadd.f32 %v473, %v1618
        %v1890 = vadd.f32 %v474, %v1796
        %v1891 = vadd.f32 %v475, %v1264
        %v1892 = vadd.f32 %v476, %v1442
        %v1893 = vadd.f32 %v477, %v1620
        %v1894 = vadd.f32 %v478, %v1798
        %v1895 = vadd.f32 %v479, %v1267
        %v1896 = vadd.f32 %v480, %v1445
        %v1897 = vadd.f32 %v481, %v1623
        %v1898 = vadd.f32 %v482, %v1801
        %v1899 = vadd.f32 %v483, %v1269
        %v1900 = vadd.f32 %v484, %v1447
        %v1901 = vadd.f32 %v485, %v1625
        %v1902 = vadd.f32 %v486, %v1803
        %v1903 = vadd.f32 %v487, %v1272
        %v1904 = vadd.f32 %v488, %v1450
        %v1905 = vadd.f32 %v489, %v1628
        %v1906 = vadd.f32 %v490, %v1806
        %v1907 = vadd.f32 %v491, %v1274
        %v1908 = vadd.f32 %v492, %v1452
        %v1909 = vadd.f32 %v493, %v1630
        %v1910 = vadd.f32 %v494, %v1808
        %v1911 = vadd.f32 %v495, %v1277
        %v1912 = vadd.f32 %v496, %v1455
        %v1913 = vadd.f32 %v497, %v1633
        %v1914 = vadd.f32 %v498, %v1811
        %v1915 = vadd.f32 %v499, %v1279
        %v1916 = vadd.f32 %v500, %v1457
        %v1917 = vadd.f32 %v501, %v1635
        %v1918 = vadd.f32 %v502, %v1813
        %v1919 = vadd.f32 %v503, %v1282
        %v1920 = vadd.f32 %v504, %v1460
        %v1921 = vadd.f32 %v505, %v1638
        %v1922 = vadd.f32 %v506, %v1816
        %v1923 = vadd.f32 %v507, %v1284
        %v1924 = vadd.f32 %v508, %v1462
        %v1925 = vadd.f32 %v509, %v1640
        %v1926 = vadd.f32 %v510, %v1818
        %v1927 = vadd.f32 %v511, %v1287
        %v1928 = vadd.f32 %v512, %v1465
        %v1929 = vadd.f32 %v513, %v1643
        %v1930 = vadd.f32 %v514, %v1821
        %v1931 = vadd.f32 %v515, %v1289
        %v1932 = vadd.f32 %v516, %v1467
        %v1933 = vadd.f32 %v517, %v1645
        %v1934 = vadd.f32 %v518, %v1823
        %v1935 = vadd.f32 %v519, %v1292
        %v1936 = vadd.f32 %v520, %v1470
        %v1937 = vadd.f32 %v521, %v1648
        %v1938 = vadd.f32 %v522, %v1826
        %v1939 = vadd.f32 %v523, %v1294
        %v1940 = vadd.f32 %v524, %v1472
        %v1941 = vadd.f32 %v525, %v1650
        %v1942 = vadd.f32 %v526, %v1828
        %v1943 = vadd.f32 %v527, %v1297
        %v1944 = vadd.f32 %v528, %v1475
        %v1945 = vadd.f32 %v529, %v1653
        %v1946 = vadd.f32 %v530, %v1831
        %v1947 = vadd.f32 %v531, %v1299
        %v1948 = vadd.f32 %v532, %v1477
        %v1949 = vadd.f32 %v533, %v1655
        %v1950 = vadd.f32 %v534, %v1833
        %v1951 = vadd.f32 %v535, %v1302
        %v1952 = vadd.f32 %v536, %v1480
        %v1953 = vadd.f32 %v537, %v1658
        %v1954 = vadd.f32 %v538, %v1836
        %v1955 = vadd.f32 %v539, %v1304
        %v1956 = vadd.f32 %v540, %v1482
        %v1957 = vadd.f32 %v541, %v1660
        %v1958 = vadd.f32 %v542, %v1838
        %v1959 = vadd.f32 %v543, %v1307
        %v1960 = vadd.f32 %v544, %v1485
        %v1961 = vadd.f32 %v545, %v1663
        %v1962 = vadd.f32 %v546, %v1841
        %v1963 = vadd.f32 %v547, %v1309
        %v1964 = vadd.f32 %v548, %v1487
        %v1965 = vadd.f32 %v549, %v1665
        %v1966 = vadd.f32 %v550, %v1843
        %v1967 = vadd.f32 %v551, %v1312
        %v1968 = vadd.f32 %v552, %v1490
        %v1969 = vadd.f32 %v553, %v1668
        %v1970 = vadd.f32 %v554, %v1846
        %v1971 = vadd.f32 %v555, %v1314
        %v1972 = vadd.f32 %v556, %v1492
        %v1973 = vadd.f32 %v557, %v1670
        %v1974 = vadd.f32 %v558, %v1848
        %v1975 = vadd.f32 %v559, %v1317
        %v1976 = vadd.f32 %v560, %v1495
        %v1977 = vadd.f32 %v561, %v1673
        %v1978 = vadd.f32 %v562, %v1851
        %v1979 = vadd.f32 %v563, %v1319
        %v1980 = vadd.f32 %v564, %v1497
        %v1981 = vadd.f32 %v565, %v1675
        %v1982 = vadd.f32 %v566, %v1853
        %1983 = vst [vmem:[#allocation2] sm:$0xff] %v1855
        %1984 = vst [vmem:[#allocation2 + $0x8] sm:$0xff] %v1856
        %1985 = vst [vmem:[#allocation2 + $0x10] sm:$0xff] %v1857
        %1986 = vst [vmem:[#allocation2 + $0x18] sm:$0xff] %v1858
        %1987 = vst [vmem:[#allocation2 + $0x20] sm:$0xff] %v1859
        %1988 = vst [vmem:[#allocation2 + $0x28] sm:$0xff] %v1860
        %1989 = vst [vmem:[#allocation2 + $0x30] sm:$0xff] %v1861
        %1990 = vst [vmem:[#allocation2 + $0x38] sm:$0xff] %v1862
        %1991 = vst [vmem:[#allocation2 + $0x40] sm:$0xff] %v1863
        %1992 = vst [vmem:[#allocation2 + $0x48] sm:$0xff] %v1864
        %1993 = vst [vmem:[#allocation2 + $0x50] sm:$0xff] %v1865
        %1994 = vst [vmem:[#allocation2 + $0x58] sm:$0xff] %v1866
        %1995 = vst [vmem:[#allocation2 + $0x60] sm:$0xff] %v1867
        %1996 = vst [vmem:[#allocation2 + $0x68] sm:$0xff] %v1868
        %1997 = vst [vmem:[#allocation2 + $0x70] sm:$0xff] %v1869
        %1998 = vst [vmem:[#allocation2 + $0x78] sm:$0xff] %v1870
        %1999 = vst [vmem:[#allocation2 + $0x80] sm:$0xff] %v1871
        %2000 = vst [vmem:[#allocation2 + $0x88] sm:$0xff] %v1872
        %2001 = vst [vmem:[#allocation2 + $0x90] sm:$0xff] %v1873
        %2002 = vst [vmem:[#allocation2 + $0x98] sm:$0xff] %v1874
        %2003 = vst [vmem:[#allocation2 + $0xa0] sm:$0xff] %v1875
        %2004 = vst [vmem:[#allocation2 + $0xa8] sm:$0xff] %v1876
        %2005 = vst [vmem:[#allocation2 + $0xb0] sm:$0xff] %v1877
        %2006 = vst [vmem:[#allocation2 + $0xb8] sm:$0xff] %v1878
        %2007 = vst [vmem:[#allocation2 + $0xc0] sm:$0xff] %v1879
        %2008 = vst [vmem:[#allocation2 + $0xc8] sm:$0xff] %v1880
        %2009 = vst [vmem:[#allocation2 + $0xd0] sm:$0xff] %v1881
        %2010 = vst [vmem:[#allocation2 + $0xd8] sm:$0xff] %v1882
        %2011 = vst [vmem:[#allocation2 + $0xe0] sm:$0xff] %v1883
        %2012 = vst [vmem:[#allocation2 + $0xe8] sm:$0xff] %v1884
        %2013 = vst [vmem:[#allocation2 + $0xf0] sm:$0xff] %v1885
        %2014 = vst [vmem:[#allocation2 + $0xf8] sm:$0xff] %v1886
        %2015 = vst [vmem:[#allocation2 + $0x100] sm:$0xff] %v1887
        %2016 = vst [vmem:[#allocation2 + $0x108] sm:$0xff] %v1888
        %2017 = vst [vmem:[#allocation2 + $0x110] sm:$0xff] %v1889
        %2018 = vst [vmem:[#allocation2 + $0x118] sm:$0xff] %v1890
        %2019 = vst [vmem:[#allocation2 + $0x120] sm:$0xff] %v1891
        %2020 = vst [vmem:[#allocation2 + $0x128] sm:$0xff] %v1892
        %2021 = vst [vmem:[#allocation2 + $0x130] sm:$0xff] %v1893
        %2022 = vst [vmem:[#allocation2 + $0x138] sm:$0xff] %v1894
        %2023 = vst [vmem:[#allocation2 + $0x140] sm:$0xff] %v1895
        %2024 = vst [vmem:[#allocation2 + $0x148] sm:$0xff] %v1896
        %2025 = vst [vmem:[#allocation2 + $0x150] sm:$0xff] %v1897
        %2026 = vst [vmem:[#allocation2 + $0x158] sm:$0xff] %v1898
        %2027 = vst [vmem:[#allocation2 + $0x160] sm:$0xff] %v1899
        %2028 = vst [vmem:[#allocation2 + $0x168] sm:$0xff] %v1900
        %2029 = vst [vmem:[#allocation2 + $0x170] sm:$0xff] %v1901
        %2030 = vst [vmem:[#allocation2 + $0x178] sm:$0xff] %v1902
        %2031 = vst [vmem:[#allocation2 + $0x180] sm:$0xff] %v1903
        %2032 = vst [vmem:[#allocation2 + $0x188] sm:$0xff] %v1904
        %2033 = vst [vmem:[#allocation2 + $0x190] sm:$0xff] %v1905
        %2034 = vst [vmem:[#allocation2 + $0x198] sm:$0xff] %v1906
        %2035 = vst [vmem:[#allocation2 + $0x1a0] sm:$0xff] %v1907
        %2036 = vst [vmem:[#allocation2 + $0x1a8] sm:$0xff] %v1908
        %2037 = vst [vmem:[#allocation2 + $0x1b0] sm:$0xff] %v1909
        %2038 = vst [vmem:[#allocation2 + $0x1b8] sm:$0xff] %v1910
        %2039 = vst [vmem:[#allocation2 + $0x1c0] sm:$0xff] %v1911
        %2040 = vst [vmem:[#allocation2 + $0x1c8] sm:$0xff] %v1912
        %2041 = vst [vmem:[#allocation2 + $0x1d0] sm:$0xff] %v1913
        %2042 = vst [vmem:[#allocation2 + $0x1d8] sm:$0xff] %v1914
        %2043 = vst [vmem:[#allocation2 + $0x1e0] sm:$0xff] %v1915
        %2044 = vst [vmem:[#allocation2 + $0x1e8] sm:$0xff] %v1916
        %2045 = vst [vmem:[#allocation2 + $0x1f0] sm:$0xff] %v1917
        %2046 = vst [vmem:[#allocation2 + $0x1f8] sm:$0xff] %v1918
        %2047 = vst [vmem:[#allocation2 + $0x200] sm:$0xff] %v1919
        %2048 = vst [vmem:[#allocation2 + $0x208] sm:$0xff] %v1920
        %2049 = vst [vmem:[#allocation2 + $0x210] sm:$0xff] %v1921
        %2050 = vst [vmem:[#allocation2 + $0x218] sm:$0xff] %v1922
        %2051 = vst [vmem:[#allocation2 + $0x220] sm:$0xff] %v1923
        %2052 = vst [vmem:[#allocation2 + $0x228] sm:$0xff] %v1924
        %2053 = vst [vmem:[#allocation2 + $0x230] sm:$0xff] %v1925
        %2054 = vst [vmem:[#allocation2 + $0x238] sm:$0xff] %v1926
        %2055 = vst [vmem:[#allocation2 + $0x240] sm:$0xff] %v1927
        %2056 = vst [vmem:[#allocation2 + $0x248] sm:$0xff] %v1928
        %2057 = vst [vmem:[#allocation2 + $0x250] sm:$0xff] %v1929
        %2058 = vst [vmem:[#allocation2 + $0x258] sm:$0xff] %v1930
        %2059 = vst [vmem:[#allocation2 + $0x260] sm:$0xff] %v1931
        %2060 = vst [vmem:[#allocation2 + $0x268] sm:$0xff] %v1932
        %2061 = vst [vmem:[#allocation2 + $0x270] sm:$0xff] %v1933
        %2062 = vst [vmem:[#allocation2 + $0x278] sm:$0xff] %v1934
        %2063 = vst [vmem:[#allocation2 + $0x280] sm:$0xff] %v1935
        %2064 = vst [vmem:[#allocation2 + $0x288] sm:$0xff] %v1936
        %2065 = vst [vmem:[#allocation2 + $0x290] sm:$0xff] %v1937
        %2066 = vst [vmem:[#allocation2 + $0x298] sm:$0xff] %v1938
        %2067 = vst [vmem:[#allocation2 + $0x2a0] sm:$0xff] %v1939
        %2068 = vst [vmem:[#allocation2 + $0x2a8] sm:$0xff] %v1940
        %2069 = vst [vmem:[#allocation2 + $0x2b0] sm:$0xff] %v1941
        %2070 = vst [vmem:[#allocation2 + $0x2b8] sm:$0xff] %v1942
        %2071 = vst [vmem:[#allocation2 + $0x2c0] sm:$0xff] %v1943
        %2072 = vst [vmem:[#allocation2 + $0x2c8] sm:$0xff] %v1944
        %2073 = vst [vmem:[#allocation2 + $0x2d0] sm:$0xff] %v1945
        %2074 = vst [vmem:[#allocation2 + $0x2d8] sm:$0xff] %v1946
        %2075 = vst [vmem:[#allocation2 + $0x2e0] sm:$0xff] %v1947
        %2076 = vst [vmem:[#allocation2 + $0x2e8] sm:$0xff] %v1948
        %2077 = vst [vmem:[#allocation2 + $0x2f0] sm:$0xff] %v1949
        %2078 = vst [vmem:[#allocation2 + $0x2f8] sm:$0xff] %v1950
        %2079 = vst [vmem:[#allocation2 + $0x300] sm:$0xff] %v1951
        %2080 = vst [vmem:[#allocation2 + $0x308] sm:$0xff] %v1952
        %2081 = vst [vmem:[#allocation2 + $0x310] sm:$0xff] %v1953
        %2082 = vst [vmem:[#allocation2 + $0x318] sm:$0xff] %v1954
        %2083 = vst [vmem:[#allocation2 + $0x320] sm:$0xff] %v1955
        %2084 = vst [vmem:[#allocation2 + $0x328] sm:$0xff] %v1956
        %2085 = vst [vmem:[#allocation2 + $0x330] sm:$0xff] %v1957
        %2086 = vst [vmem:[#allocation2 + $0x338] sm:$0xff] %v1958
        %2087 = vst [vmem:[#allocation2 + $0x340] sm:$0xff] %v1959
        %2088 = vst [vmem:[#allocation2 + $0x348] sm:$0xff] %v1960
        %2089 = vst [vmem:[#allocation2 + $0x350] sm:$0xff] %v1961
        %2090 = vst [vmem:[#allocation2 + $0x358] sm:$0xff] %v1962
        %2091 = vst [vmem:[#allocation2 + $0x360] sm:$0xff] %v1963
        %2092 = vst [vmem:[#allocation2 + $0x368] sm:$0xff] %v1964
        %2093 = vst [vmem:[#allocation2 + $0x370] sm:$0xff] %v1965
        %2094 = vst [vmem:[#allocation2 + $0x378] sm:$0xff] %v1966
        %2095 = vst [vmem:[#allocation2 + $0x380] sm:$0xff] %v1967
        %2096 = vst [vmem:[#allocation2 + $0x388] sm:$0xff] %v1968
        %2097 = vst [vmem:[#allocation2 + $0x390] sm:$0xff] %v1969
        %2098 = vst [vmem:[#allocation2 + $0x398] sm:$0xff] %v1970
        %2099 = vst [vmem:[#allocation2 + $0x3a0] sm:$0xff] %v1971
        %2100 = vst [vmem:[#allocation2 + $0x3a8] sm:$0xff] %v1972
        %2101 = vst [vmem:[#allocation2 + $0x3b0] sm:$0xff] %v1973
        %2102 = vst [vmem:[#allocation2 + $0x3b8] sm:$0xff] %v1974
        %2103 = vst [vmem:[#allocation2 + $0x3c0] sm:$0xff] %v1975
        %2104 = vst [vmem:[#allocation2 + $0x3c8] sm:$0xff] %v1976
        %2105 = vst [vmem:[#allocation2 + $0x3d0] sm:$0xff] %v1977
        %2106 = vst [vmem:[#allocation2 + $0x3d8] sm:$0xff] %v1978
        %2107 = vst [vmem:[#allocation2 + $0x3e0] sm:$0xff] %v1979
        %2108 = vst [vmem:[#allocation2 + $0x3e8] sm:$0xff] %v1980
        %2109 = vst [vmem:[#allocation2 + $0x3f0] sm:$0xff] %v1981
        %2110 = vst [vmem:[#allocation2 + $0x3f8] sm:$0xff] %v1982
        %p2111 = scmp.eq.s32.totalorder %s30, 1
        // Predicated region
        $region49: #{tpu_custom_call.1} parent=31 // pred_check
          %p2112 = pneg %p2111
        $region50: #{tpu_custom_call.1} parent=31 // pred_check_branch
          %2114 = sbr.rel (%p2112) target = $region52
        $region51: #{tpu_custom_call.1} parent=31 // pred_region
          %v2115 = vld [vmem:[#allocation2] sm:$0xff]
          %v2116 = vld [vmem:[#allocation2 + $0x8] sm:$0xff]
          %v2117 = vld [vmem:[#allocation2 + $0x10] sm:$0xff]
          %v2118 = vld [vmem:[#allocation2 + $0x18] sm:$0xff]
          %v2119 = vld [vmem:[#allocation2 + $0x20] sm:$0xff]
          %v2120 = vld [vmem:[#allocation2 + $0x28] sm:$0xff]
          %v2121 = vld [vmem:[#allocation2 + $0x30] sm:$0xff]
          %v2122 = vld [vmem:[#allocation2 + $0x38] sm:$0xff]
          %v2123 = vld [vmem:[#allocation2 + $0x40] sm:$0xff]
          %v2124 = vld [vmem:[#allocation2 + $0x48] sm:$0xff]
          %v2125 = vld [vmem:[#allocation2 + $0x50] sm:$0xff]
          %v2126 = vld [vmem:[#allocation2 + $0x58] sm:$0xff]
          %v2127 = vld [vmem:[#allocation2 + $0x60] sm:$0xff]
          %v2128 = vld [vmem:[#allocation2 + $0x68] sm:$0xff]
          %v2129 = vld [vmem:[#allocation2 + $0x70] sm:$0xff]
          %v2130 = vld [vmem:[#allocation2 + $0x78] sm:$0xff]
          %v2131 = vld [vmem:[#allocation2 + $0x80] sm:$0xff]
          %v2132 = vld [vmem:[#allocation2 + $0x88] sm:$0xff]
          %v2133 = vld [vmem:[#allocation2 + $0x90] sm:$0xff]
          %v2134 = vld [vmem:[#allocation2 + $0x98] sm:$0xff]
          %v2135 = vld [vmem:[#allocation2 + $0xa0] sm:$0xff]
          %v2136 = vld [vmem:[#allocation2 + $0xa8] sm:$0xff]
          %v2137 = vld [vmem:[#allocation2 + $0xb0] sm:$0xff]
          %v2138 = vld [vmem:[#allocation2 + $0xb8] sm:$0xff]
          %v2139 = vld [vmem:[#allocation2 + $0xc0] sm:$0xff]
          %v2140 = vld [vmem:[#allocation2 + $0xc8] sm:$0xff]
          %v2141 = vld [vmem:[#allocation2 + $0xd0] sm:$0xff]
          %v2142 = vld [vmem:[#allocation2 + $0xd8] sm:$0xff]
          %v2143 = vld [vmem:[#allocation2 + $0xe0] sm:$0xff]
          %v2144 = vld [vmem:[#allocation2 + $0xe8] sm:$0xff]
          %v2145 = vld [vmem:[#allocation2 + $0xf0] sm:$0xff]
          %v2146 = vld [vmem:[#allocation2 + $0xf8] sm:$0xff]
          %v2147 = vld [vmem:[#allocation2 + $0x100] sm:$0xff]
          %v2148 = vld [vmem:[#allocation2 + $0x108] sm:$0xff]
          %v2149 = vld [vmem:[#allocation2 + $0x110] sm:$0xff]
          %v2150 = vld [vmem:[#allocation2 + $0x118] sm:$0xff]
          %v2151 = vld [vmem:[#allocation2 + $0x120] sm:$0xff]
          %v2152 = vld [vmem:[#allocation2 + $0x128] sm:$0xff]
          %v2153 = vld [vmem:[#allocation2 + $0x130] sm:$0xff]
          %v2154 = vld [vmem:[#allocation2 + $0x138] sm:$0xff]
          %v2155 = vld [vmem:[#allocation2 + $0x140] sm:$0xff]
          %v2156 = vld [vmem:[#allocation2 + $0x148] sm:$0xff]
          %v2157 = vld [vmem:[#allocation2 + $0x150] sm:$0xff]
          %v2158 = vld [vmem:[#allocation2 + $0x158] sm:$0xff]
          %v2159 = vld [vmem:[#allocation2 + $0x160] sm:$0xff]
          %v2160 = vld [vmem:[#allocation2 + $0x168] sm:$0xff]
          %v2161 = vld [vmem:[#allocation2 + $0x170] sm:$0xff]
          %v2162 = vld [vmem:[#allocation2 + $0x178] sm:$0xff]
          %v2163 = vld [vmem:[#allocation2 + $0x180] sm:$0xff]
          %v2164 = vld [vmem:[#allocation2 + $0x188] sm:$0xff]
          %v2165 = vld [vmem:[#allocation2 + $0x190] sm:$0xff]
          %v2166 = vld [vmem:[#allocation2 + $0x198] sm:$0xff]
          %v2167 = vld [vmem:[#allocation2 + $0x1a0] sm:$0xff]
          %v2168 = vld [vmem:[#allocation2 + $0x1a8] sm:$0xff]
          %v2169 = vld [vmem:[#allocation2 + $0x1b0] sm:$0xff]
          %v2170 = vld [vmem:[#allocation2 + $0x1b8] sm:$0xff]
          %v2171 = vld [vmem:[#allocation2 + $0x1c0] sm:$0xff]
          %v2172 = vld [vmem:[#allocation2 + $0x1c8] sm:$0xff]
          %v2173 = vld [vmem:[#allocation2 + $0x1d0] sm:$0xff]
          %v2174 = vld [vmem:[#allocation2 + $0x1d8] sm:$0xff]
          %v2175 = vld [vmem:[#allocation2 + $0x1e0] sm:$0xff]
          %v2176 = vld [vmem:[#allocation2 + $0x1e8] sm:$0xff]
          %v2177 = vld [vmem:[#allocation2 + $0x1f0] sm:$0xff]
          %v2178 = vld [vmem:[#allocation2 + $0x1f8] sm:$0xff]
          %v2179 = vld [vmem:[#allocation2 + $0x200] sm:$0xff]
          %v2180 = vld [vmem:[#allocation2 + $0x208] sm:$0xff]
          %v2181 = vld [vmem:[#allocation2 + $0x210] sm:$0xff]
          %v2182 = vld [vmem:[#allocation2 + $0x218] sm:$0xff]
          %v2183 = vld [vmem:[#allocation2 + $0x220] sm:$0xff]
          %v2184 = vld [vmem:[#allocation2 + $0x228] sm:$0xff]
          %v2185 = vld [vmem:[#allocation2 + $0x230] sm:$0xff]
          %v2186 = vld [vmem:[#allocation2 + $0x238] sm:$0xff]
          %v2187 = vld [vmem:[#allocation2 + $0x240] sm:$0xff]
          %v2188 = vld [vmem:[#allocation2 + $0x248] sm:$0xff]
          %v2189 = vld [vmem:[#allocation2 + $0x250] sm:$0xff]
          %v2190 = vld [vmem:[#allocation2 + $0x258] sm:$0xff]
          %v2191 = vld [vmem:[#allocation2 + $0x260] sm:$0xff]
          %v2192 = vld [vmem:[#allocation2 + $0x268] sm:$0xff]
          %v2193 = vld [vmem:[#allocation2 + $0x270] sm:$0xff]
          %v2194 = vld [vmem:[#allocation2 + $0x278] sm:$0xff]
          %v2195 = vld [vmem:[#allocation2 + $0x280] sm:$0xff]
          %v2196 = vld [vmem:[#allocation2 + $0x288] sm:$0xff]
          %v2197 = vld [vmem:[#allocation2 + $0x290] sm:$0xff]
          %v2198 = vld [vmem:[#allocation2 + $0x298] sm:$0xff]
          %v2199 = vld [vmem:[#allocation2 + $0x2a0] sm:$0xff]
          %v2200 = vld [vmem:[#allocation2 + $0x2a8] sm:$0xff]
          %v2201 = vld [vmem:[#allocation2 + $0x2b0] sm:$0xff]
          %v2202 = vld [vmem:[#allocation2 + $0x2b8] sm:$0xff]
          %v2203 = vld [vmem:[#allocation2 + $0x2c0] sm:$0xff]
          %v2204 = vld [vmem:[#allocation2 + $0x2c8] sm:$0xff]
          %v2205 = vld [vmem:[#allocation2 + $0x2d0] sm:$0xff]
          %v2206 = vld [vmem:[#allocation2 + $0x2d8] sm:$0xff]
          %v2207 = vld [vmem:[#allocation2 + $0x2e0] sm:$0xff]
          %v2208 = vld [vmem:[#allocation2 + $0x2e8] sm:$0xff]
          %v2209 = vld [vmem:[#allocation2 + $0x2f0] sm:$0xff]
          %v2210 = vld [vmem:[#allocation2 + $0x2f8] sm:$0xff]
          %v2211 = vld [vmem:[#allocation2 + $0x300] sm:$0xff]
          %v2212 = vld [vmem:[#allocation2 + $0x308] sm:$0xff]
          %v2213 = vld [vmem:[#allocation2 + $0x310] sm:$0xff]
          %v2214 = vld [vmem:[#allocation2 + $0x318] sm:$0xff]
          %v2215 = vld [vmem:[#allocation2 + $0x320] sm:$0xff]
          %v2216 = vld [vmem:[#allocation2 + $0x328] sm:$0xff]
          %v2217 = vld [vmem:[#allocation2 + $0x330] sm:$0xff]
          %v2218 = vld [vmem:[#allocation2 + $0x338] sm:$0xff]
          %v2219 = vld [vmem:[#allocation2 + $0x340] sm:$0xff]
          %v2220 = vld [vmem:[#allocation2 + $0x348] sm:$0xff]
          %v2221 = vld [vmem:[#allocation2 + $0x350] sm:$0xff]
          %v2222 = vld [vmem:[#allocation2 + $0x358] sm:$0xff]
          %v2223 = vld [vmem:[#allocation2 + $0x360] sm:$0xff]
          %v2224 = vld [vmem:[#allocation2 + $0x368] sm:$0xff]
          %v2225 = vld [vmem:[#allocation2 + $0x370] sm:$0xff]
          %v2226 = vld [vmem:[#allocation2 + $0x378] sm:$0xff]
          %v2227 = vld [vmem:[#allocation2 + $0x380] sm:$0xff]
          %v2228 = vld [vmem:[#allocation2 + $0x388] sm:$0xff]
          %v2229 = vld [vmem:[#allocation2 + $0x390] sm:$0xff]
          %v2230 = vld [vmem:[#allocation2 + $0x398] sm:$0xff]
          %v2231 = vld [vmem:[#allocation2 + $0x3a0] sm:$0xff]
          %v2232 = vld [vmem:[#allocation2 + $0x3a8] sm:$0xff]
          %v2233 = vld [vmem:[#allocation2 + $0x3b0] sm:$0xff]
          %v2234 = vld [vmem:[#allocation2 + $0x3b8] sm:$0xff]
          %v2235 = vld [vmem:[#allocation2 + $0x3c0] sm:$0xff]
          %v2236 = vld [vmem:[#allocation2 + $0x3c8] sm:$0xff]
          %v2237 = vld [vmem:[#allocation2 + $0x3d0] sm:$0xff]
          %v2238 = vld [vmem:[#allocation2 + $0x3d8] sm:$0xff]
          %v2239 = vld [vmem:[#allocation2 + $0x3e0] sm:$0xff]
          %v2240 = vld [vmem:[#allocation2 + $0x3e8] sm:$0xff]
          %v2241 = vld [vmem:[#allocation2 + $0x3f0] sm:$0xff]
          %v2242 = vld [vmem:[#allocation2 + $0x3f8] sm:$0xff]
          %v2243 = vld [vmem:[%s266] sm:$0xf]
          %v2245 = vperm.slane %v2243, 0
          %v2246 = vperm.slane %v2243, 1
          %v2247 = vperm.slane %v2243, 2
          %v2248 = vperm.slane %v2243, 3
          %v2253 = vadd.f32 %v2115, %v2245
          %v2254 = vadd.f32 %v2116, %v2246
          %v2255 = vadd.f32 %v2117, %v2247
          %v2256 = vadd.f32 %v2118, %v2248
          %v2257 = vadd.f32 %v2119, %v2245
          %v2258 = vadd.f32 %v2120, %v2246
          %v2259 = vadd.f32 %v2121, %v2247
          %v2260 = vadd.f32 %v2122, %v2248
          %v2261 = vadd.f32 %v2123, %v2245
          %v2262 = vadd.f32 %v2124, %v2246
          %v2263 = vadd.f32 %v2125, %v2247
          %v2264 = vadd.f32 %v2126, %v2248
          %v2265 = vadd.f32 %v2127, %v2245
          %v2266 = vadd.f32 %v2128, %v2246
          %v2267 = vadd.f32 %v2129, %v2247
          %v2268 = vadd.f32 %v2130, %v2248
          %v2269 = vadd.f32 %v2131, %v2245
          %v2270 = vadd.f32 %v2132, %v2246
          %v2271 = vadd.f32 %v2133, %v2247
          %v2272 = vadd.f32 %v2134, %v2248
          %v2273 = vadd.f32 %v2135, %v2245
          %v2274 = vadd.f32 %v2136, %v2246
          %v2275 = vadd.f32 %v2137, %v2247
          %v2276 = vadd.f32 %v2138, %v2248
          %v2277 = vadd.f32 %v2139, %v2245
          %v2278 = vadd.f32 %v2140, %v2246
          %v2279 = vadd.f32 %v2141, %v2247
          %v2280 = vadd.f32 %v2142, %v2248
          %v2281 = vadd.f32 %v2143, %v2245
          %v2282 = vadd.f32 %v2144, %v2246
          %v2283 = vadd.f32 %v2145, %v2247
          %v2284 = vadd.f32 %v2146, %v2248
          %v2285 = vadd.f32 %v2147, %v2245
          %v2286 = vadd.f32 %v2148, %v2246
          %v2287 = vadd.f32 %v2149, %v2247
          %v2288 = vadd.f32 %v2150, %v2248
          %v2289 = vadd.f32 %v2151, %v2245
          %v2290 = vadd.f32 %v2152, %v2246
          %v2291 = vadd.f32 %v2153, %v2247
          %v2292 = vadd.f32 %v2154, %v2248
          %v2293 = vadd.f32 %v2155, %v2245
          %v2294 = vadd.f32 %v2156, %v2246
          %v2295 = vadd.f32 %v2157, %v2247
          %v2296 = vadd.f32 %v2158, %v2248
          %v2297 = vadd.f32 %v2159, %v2245
          %v2298 = vadd.f32 %v2160, %v2246
          %v2299 = vadd.f32 %v2161, %v2247
          %v2300 = vadd.f32 %v2162, %v2248
          %v2301 = vadd.f32 %v2163, %v2245
          %v2302 = vadd.f32 %v2164, %v2246
          %v2303 = vadd.f32 %v2165, %v2247
          %v2304 = vadd.f32 %v2166, %v2248
          %v2305 = vadd.f32 %v2167, %v2245
          %v2306 = vadd.f32 %v2168, %v2246
          %v2307 = vadd.f32 %v2169, %v2247
          %v2308 = vadd.f32 %v2170, %v2248
          %v2309 = vadd.f32 %v2171, %v2245
          %v2310 = vadd.f32 %v2172, %v2246
          %v2311 = vadd.f32 %v2173, %v2247
          %v2312 = vadd.f32 %v2174, %v2248
          %v2313 = vadd.f32 %v2175, %v2245
          %v2314 = vadd.f32 %v2176, %v2246
          %v2315 = vadd.f32 %v2177, %v2247
          %v2316 = vadd.f32 %v2178, %v2248
          %v2317 = vadd.f32 %v2179, %v2245
          %v2318 = vadd.f32 %v2180, %v2246
          %v2319 = vadd.f32 %v2181, %v2247
          %v2320 = vadd.f32 %v2182, %v2248
          %v2321 = vadd.f32 %v2183, %v2245
          %v2322 = vadd.f32 %v2184, %v2246
          %v2323 = vadd.f32 %v2185, %v2247
          %v2324 = vadd.f32 %v2186, %v2248
          %v2325 = vadd.f32 %v2187, %v2245
          %v2326 = vadd.f32 %v2188, %v2246
          %v2327 = vadd.f32 %v2189, %v2247
          %v2328 = vadd.f32 %v2190, %v2248
          %v2329 = vadd.f32 %v2191, %v2245
          %v2330 = vadd.f32 %v2192, %v2246
          %v2331 = vadd.f32 %v2193, %v2247
          %v2332 = vadd.f32 %v2194, %v2248
          %v2333 = vadd.f32 %v2195, %v2245
          %v2334 = vadd.f32 %v2196, %v2246
          %v2335 = vadd.f32 %v2197, %v2247
          %v2336 = vadd.f32 %v2198, %v2248
          %v2337 = vadd.f32 %v2199, %v2245
          %v2338 = vadd.f32 %v2200, %v2246
          %v2339 = vadd.f32 %v2201, %v2247
          %v2340 = vadd.f32 %v2202, %v2248
          %v2341 = vadd.f32 %v2203, %v2245
          %v2342 = vadd.f32 %v2204, %v2246
          %v2343 = vadd.f32 %v2205, %v2247
          %v2344 = vadd.f32 %v2206, %v2248
          %v2345 = vadd.f32 %v2207, %v2245
          %v2346 = vadd.f32 %v2208, %v2246
          %v2347 = vadd.f32 %v2209, %v2247
          %v2348 = vadd.f32 %v2210, %v2248
          %v2349 = vadd.f32 %v2211, %v2245
          %v2350 = vadd.f32 %v2212, %v2246
          %v2351 = vadd.f32 %v2213, %v2247
          %v2352 = vadd.f32 %v2214, %v2248
          %v2353 = vadd.f32 %v2215, %v2245
          %v2354 = vadd.f32 %v2216, %v2246
          %v2355 = vadd.f32 %v2217, %v2247
          %v2356 = vadd.f32 %v2218, %v2248
          %v2357 = vadd.f32 %v2219, %v2245
          %v2358 = vadd.f32 %v2220, %v2246
          %v2359 = vadd.f32 %v2221, %v2247
          %v2360 = vadd.f32 %v2222, %v2248
          %v2361 = vadd.f32 %v2223, %v2245
          %v2362 = vadd.f32 %v2224, %v2246
          %v2363 = vadd.f32 %v2225, %v2247
          %v2364 = vadd.f32 %v2226, %v2248
          %v2365 = vadd.f32 %v2227, %v2245
          %v2366 = vadd.f32 %v2228, %v2246
          %v2367 = vadd.f32 %v2229, %v2247
          %v2368 = vadd.f32 %v2230, %v2248
          %v2369 = vadd.f32 %v2231, %v2245
          %v2370 = vadd.f32 %v2232, %v2246
          %v2371 = vadd.f32 %v2233, %v2247
          %v2372 = vadd.f32 %v2234, %v2248
          %v2373 = vadd.f32 %v2235, %v2245
          %v2374 = vadd.f32 %v2236, %v2246
          %v2375 = vadd.f32 %v2237, %v2247
          %v2376 = vadd.f32 %v2238, %v2248
          %v2377 = vadd.f32 %v2239, %v2245
          %v2378 = vadd.f32 %v2240, %v2246
          %v2379 = vadd.f32 %v2241, %v2247
          %v2380 = vadd.f32 %v2242, %v2248
          %v2381 = vpack.c.bf16 %v2254, %v2253
          %v2382 = vpack.c.bf16 %v2256, %v2255
          %v2383 = vpack.c.bf16 %v2258, %v2257
          %v2384 = vpack.c.bf16 %v2260, %v2259
          %v2385 = vpack.c.bf16 %v2262, %v2261
          %v2386 = vpack.c.bf16 %v2264, %v2263
          %v2387 = vpack.c.bf16 %v2266, %v2265
          %v2388 = vpack.c.bf16 %v2268, %v2267
          %v2389 = vpack.c.bf16 %v2270, %v2269
          %v2390 = vpack.c.bf16 %v2272, %v2271
          %v2391 = vpack.c.bf16 %v2274, %v2273
          %v2392 = vpack.c.bf16 %v2276, %v2275
          %v2393 = vpack.c.bf16 %v2278, %v2277
          %v2394 = vpack.c.bf16 %v2280, %v2279
          %v2395 = vpack.c.bf16 %v2282, %v2281
          %v2396 = vpack.c.bf16 %v2284, %v2283
          %v2397 = vpack.c.bf16 %v2286, %v2285
          %v2398 = vpack.c.bf16 %v2288, %v2287
          %v2399 = vpack.c.bf16 %v2290, %v2289
          %v2400 = vpack.c.bf16 %v2292, %v2291
          %v2401 = vpack.c.bf16 %v2294, %v2293
          %v2402 = vpack.c.bf16 %v2296, %v2295
          %v2403 = vpack.c.bf16 %v2298, %v2297
          %v2404 = vpack.c.bf16 %v2300, %v2299
          %v2405 = vpack.c.bf16 %v2302, %v2301
          %v2406 = vpack.c.bf16 %v2304, %v2303
          %v2407 = vpack.c.bf16 %v2306, %v2305
          %v2408 = vpack.c.bf16 %v2308, %v2307
          %v2409 = vpack.c.bf16 %v2310, %v2309
          %v2410 = vpack.c.bf16 %v2312, %v2311
          %v2411 = vpack.c.bf16 %v2314, %v2313
          %v2412 = vpack.c.bf16 %v2316, %v2315
          %v2413 = vpack.c.bf16 %v2318, %v2317
          %v2414 = vpack.c.bf16 %v2320, %v2319
          %v2415 = vpack.c.bf16 %v2322, %v2321
          %v2416 = vpack.c.bf16 %v2324, %v2323
          %v2417 = vpack.c.bf16 %v2326, %v2325
          %v2418 = vpack.c.bf16 %v2328, %v2327
          %v2419 = vpack.c.bf16 %v2330, %v2329
          %v2420 = vpack.c.bf16 %v2332, %v2331
          %v2421 = vpack.c.bf16 %v2334, %v2333
          %v2422 = vpack.c.bf16 %v2336, %v2335
          %v2423 = vpack.c.bf16 %v2338, %v2337
          %v2424 = vpack.c.bf16 %v2340, %v2339
          %v2425 = vpack.c.bf16 %v2342, %v2341
          %v2426 = vpack.c.bf16 %v2344, %v2343
          %v2427 = vpack.c.bf16 %v2346, %v2345
          %v2428 = vpack.c.bf16 %v2348, %v2347
          %v2429 = vpack.c.bf16 %v2350, %v2349
          %v2430 = vpack.c.bf16 %v2352, %v2351
          %v2431 = vpack.c.bf16 %v2354, %v2353
          %v2432 = vpack.c.bf16 %v2356, %v2355
          %v2433 = vpack.c.bf16 %v2358, %v2357
          %v2434 = vpack.c.bf16 %v2360, %v2359
          %v2435 = vpack.c.bf16 %v2362, %v2361
          %v2436 = vpack.c.bf16 %v2364, %v2363
          %v2437 = vpack.c.bf16 %v2366, %v2365
          %v2438 = vpack.c.bf16 %v2368, %v2367
          %v2439 = vpack.c.bf16 %v2370, %v2369
          %v2440 = vpack.c.bf16 %v2372, %v2371
          %v2441 = vpack.c.bf16 %v2374, %v2373
          %v2442 = vpack.c.bf16 %v2376, %v2375
          %v2443 = vpack.c.bf16 %v2378, %v2377
          %v2444 = vpack.c.bf16 %v2380, %v2379
          %2445 = vst [vmem:[%s299] sm:$0xff] %v2381
          %2446 = vst [vmem:[%s299 + $0x8] sm:$0xff] %v2382
          %2447 = vst [vmem:[%s299 + $0x10] sm:$0xff] %v2383
          %2448 = vst [vmem:[%s299 + $0x18] sm:$0xff] %v2384
          %2449 = vst [vmem:[%s299 + $0x20] sm:$0xff] %v2385
          %2450 = vst [vmem:[%s299 + $0x28] sm:$0xff] %v2386
          %2451 = vst [vmem:[%s299 + $0x30] sm:$0xff] %v2387
          %2452 = vst [vmem:[%s299 + $0x38] sm:$0xff] %v2388
          %2453 = vst [vmem:[%s299 + $0x40] sm:$0xff] %v2389
          %2454 = vst [vmem:[%s299 + $0x48] sm:$0xff] %v2390
          %2455 = vst [vmem:[%s299 + $0x50] sm:$0xff] %v2391
          %2456 = vst [vmem:[%s299 + $0x58] sm:$0xff] %v2392
          %2457 = vst [vmem:[%s299 + $0x60] sm:$0xff] %v2393
          %2458 = vst [vmem:[%s299 + $0x68] sm:$0xff] %v2394
          %2459 = vst [vmem:[%s299 + $0x70] sm:$0xff] %v2395
          %2460 = vst [vmem:[%s299 + $0x78] sm:$0xff] %v2396
          %2461 = vst [vmem:[%s299 + $0x80] sm:$0xff] %v2397
          %2462 = vst [vmem:[%s299 + $0x88] sm:$0xff] %v2398
          %2463 = vst [vmem:[%s299 + $0x90] sm:$0xff] %v2399
          %2464 = vst [vmem:[%s299 + $0x98] sm:$0xff] %v2400
          %2465 = vst [vmem:[%s299 + $0xa0] sm:$0xff] %v2401
          %2466 = vst [vmem:[%s299 + $0xa8] sm:$0xff] %v2402
          %2467 = vst [vmem:[%s299 + $0xb0] sm:$0xff] %v2403
          %2468 = vst [vmem:[%s299 + $0xb8] sm:$0xff] %v2404
          %2469 = vst [vmem:[%s299 + $0xc0] sm:$0xff] %v2405
          %2470 = vst [vmem:[%s299 + $0xc8] sm:$0xff] %v2406
          %2471 = vst [vmem:[%s299 + $0xd0] sm:$0xff] %v2407
          %2472 = vst [vmem:[%s299 + $0xd8] sm:$0xff] %v2408
          %2473 = vst [vmem:[%s299 + $0xe0] sm:$0xff] %v2409
          %2474 = vst [vmem:[%s299 + $0xe8] sm:$0xff] %v2410
          %2475 = vst [vmem:[%s299 + $0xf0] sm:$0xff] %v2411
          %2476 = vst [vmem:[%s299 + $0xf8] sm:$0xff] %v2412
          %2477 = vst [vmem:[%s299 + $0x100] sm:$0xff] %v2413
          %2478 = vst [vmem:[%s299 + $0x108] sm:$0xff] %v2414
          %2479 = vst [vmem:[%s299 + $0x110] sm:$0xff] %v2415
          %2480 = vst [vmem:[%s299 + $0x118] sm:$0xff] %v2416
          %2481 = vst [vmem:[%s299 + $0x120] sm:$0xff] %v2417
          %2482 = vst [vmem:[%s299 + $0x128] sm:$0xff] %v2418
          %2483 = vst [vmem:[%s299 + $0x130] sm:$0xff] %v2419
          %2484 = vst [vmem:[%s299 + $0x138] sm:$0xff] %v2420
          %2485 = vst [vmem:[%s299 + $0x140] sm:$0xff] %v2421
          %2486 = vst [vmem:[%s299 + $0x148] sm:$0xff] %v2422
          %2487 = vst [vmem:[%s299 + $0x150] sm:$0xff] %v2423
          %2488 = vst [vmem:[%s299 + $0x158] sm:$0xff] %v2424
          %2489 = vst [vmem:[%s299 + $0x160] sm:$0xff] %v2425
          %2490 = vst [vmem:[%s299 + $0x168] sm:$0xff] %v2426
          %2491 = vst [vmem:[%s299 + $0x170] sm:$0xff] %v2427
          %2492 = vst [vmem:[%s299 + $0x178] sm:$0xff] %v2428
          %2493 = vst [vmem:[%s299 + $0x180] sm:$0xff] %v2429
          %2494 = vst [vmem:[%s299 + $0x188] sm:$0xff] %v2430
          %2495 = vst [vmem:[%s299 + $0x190] sm:$0xff] %v2431
          %2496 = vst [vmem:[%s299 + $0x198] sm:$0xff] %v2432
          %2497 = vst [vmem:[%s299 + $0x1a0] sm:$0xff] %v2433
          %2498 = vst [vmem:[%s299 + $0x1a8] sm:$0xff] %v2434
          %2499 = vst [vmem:[%s299 + $0x1b0] sm:$0xff] %v2435
          %2500 = vst [vmem:[%s299 + $0x1b8] sm:$0xff] %v2436
          %2501 = vst [vmem:[%s299 + $0x1c0] sm:$0xff] %v2437
          %2502 = vst [vmem:[%s299 + $0x1c8] sm:$0xff] %v2438
          %2503 = vst [vmem:[%s299 + $0x1d0] sm:$0xff] %v2439
          %2504 = vst [vmem:[%s299 + $0x1d8] sm:$0xff] %v2440
          %2505 = vst [vmem:[%s299 + $0x1e0] sm:$0xff] %v2441
          %2506 = vst [vmem:[%s299 + $0x1e8] sm:$0xff] %v2442
          %2507 = vst [vmem:[%s299 + $0x1f0] sm:$0xff] %v2443
          %2508 = vst [vmem:[%s299 + $0x1f8] sm:$0xff] %v2444
        $region52: #{tpu_custom_call.1} parent=31 // pred_fallthru
          _
        %s2509 = sand.u32 %s134, 1
        %s2510 = scalar_lea.sflag [#allocation5], %s2509
        %s2511 = sand.u32 %s134, 1
        %s2512 = smul.addr %s2511, 512
        %s2513 = scalar_lea.vmem [#allocation9], %s2512
        // Predicated region
        $region53: #{tpu_custom_call.1} parent=31 // pred_check
          %p2514 = pneg %p144
        $region54: #{tpu_custom_call.1} parent=31 // pred_check_branch
          %2516 = sbr.rel (%p2514) target = $region56
        $region55: #{tpu_custom_call.1} parent=31 // pred_region
          %s2517 = smul.u32 32, %s28
          %s2518 = smul.u32 4, %s29
          %2520 = vsyncadd %s2510, 0
          %s2521 = smul.addr %s2517, 12
          %s2522 = sadd.s32 %s2518, %s2521
          %s2523 = smul.addr %s2522, 4
          %s2524 = scalar_lea.hbm %s3, %s2523
          %s2525 = sshll.u32 %s2513, 4
          %s2526 = int_to_ptr.vmem [resolvable:$true] %s2525
          %s2527 = sshll.u32 %s2524, 4
          %s2528 = int_to_ptr.hbm [resolvable:$true] %s2527
          %2533 = dma.vmem_to_hbm [thread:$0]  %s2526, 8192, %s2528, %s2510, 256, 768, 16
        $region56: #{tpu_custom_call.1} parent=31 // pred_fallthru
          _
      $region32: #{tpu_custom_call.1} parent=5 // pred_fallthru
        _
      %p2534 = scmp.le.s32.totalorder 2, %s18
      // Predicated region
      $region57: #{tpu_custom_call.1} parent=5 // pred_check
        %p2535 = pneg %p2534
      $region58: #{tpu_custom_call.1} parent=5 // pred_check_branch
        %2537 = sbr.rel (%p2535) target = $region60
      $region59: #{tpu_custom_call.1} parent=5 // pred_region
        %s2538 = ssub.s32 %s18, 2
        // Predicated region
        $region61: #{tpu_custom_call.1} parent=59 // pred_check
          %p2539 = pneg %p150
        $region62: #{tpu_custom_call.1} parent=59 // pred_check_branch
          %2541 = sbr.rel (%p2539) target = $region64
        $region63: #{tpu_custom_call.1} parent=59 // pred_region
          %s2542 = sand.u32 %s135, 1
          %s2543 = scalar_lea.sflag [#allocation5], %s2542
          %s2544 = sand.u32 %s135, 1
          %s2545 = smul.addr %s2544, 512
          %s2546 = scalar_lea.vmem [#allocation9], %s2545
          %2548 = dma.done %s2543, 8192
        $region64: #{tpu_custom_call.1} parent=59 // pred_fallthru
          _
      $region60: #{tpu_custom_call.1} parent=5 // pred_fallthru
        _
    $region6: #{tpu_custom_call.1} parent=1 // loop_footer
      %s22 = sadd.s32 1, %s18
    $region7: #{tpu_custom_call.1} parent=1 // loop_footer_branch
      %17 = sbr.rel target = $region3
    $region8: #{tpu_custom_call.1} parent=1 // loop_exit
      _
    %2549 = vsyncpa [#allocation4], 1
    %s2550 = scalar_lea.sflag [#allocation4], 1
    %2551 = vsyncpa %s2550, 1
    %2552 = vsyncpa [#allocation7], 1
    %s2553 = scalar_lea.sflag [#allocation7], 1
    %2554 = vsyncpa %s2553, 1
    %2555 = vsyncpa [#allocation5], 1
    %s2556 = scalar_lea.sflag [#allocation5], 1
    %2557 = vsyncpa %s2556, 1

</llo_original>
